<compile_context>
chip_gen: v7x
topology: tpu7x:2x2x1
jax: 0.10.0
libtpu: 0.0.40
codegen_flags: <defaults>
</compile_context>

<pallas_src>
import functools
import numpy as np

import jax
import jax.numpy as jnp
from jax import lax
from jax.experimental import pallas as pl
from jax.experimental.pallas import tpu as pltpu

NEG_MAX = float(-jnp.finfo(jnp.float32).max)   # torch: -torch.finfo(dtype).max
LN_EPS = 1e-5                                  # torch.nn.LayerNorm default eps


# ----------------------------- kernel helpers ------------------------------

def _layernorm(x, w, b):
    mu = jnp.mean(x, axis=-1, keepdims=True)
    var = jnp.mean((x - mu) ** 2, axis=-1, keepdims=True)   # biased, like torch LN
    return (x - mu) * lax.rsqrt(var + LN_EPS) * w + b


def _gelu_exact(x):
    # F.gelu default (erf-based, exact) — kept exact to match the torch reference.
    return 0.5 * x * (1.0 + lax.erf(x * 0.7071067811865476))


# ------------------------------ fused kernel -------------------------------

def fused_forward_kernel(
    x_ref, mask_ref,
    wqkv_ref, wproj_ref, w1_ref, w2_ref, lvec_ref, b1_ref,
    normw_ref, normb_ref, apw_ref, apb_ref, fcw_ref, fcb_ref,
    out_ref,
    x_sc, bias_sc,
    *, num_heads, tokens_per_sample):
    """Grid = (batch_block, layer).  x_sc keeps the activations resident in VMEM
    across the layer axis; bias_sc holds the per-sample additive attention bias."""
    l = pl.program_id(1)
    num_layers = pl.num_programs(1)
    M, C = x_sc.shape                 # M = BB * N (flattened tokens of this block)
    N = tokens_per_sample
    BB = M // N
    H = num_heads
    dh = C // H
    scale = dh ** -0.5

    # ---- once per batch block: load activations, build per-sample mask bias ----
    @pl.when(l == 0)
    def _init():
        x_sc[...] = x_ref[0]                                   # (M, C)
        m = mask_ref[0]                                        # (BB, N) f32, 1 = keep
        pair = m[:, :, None] * m[:, None, :]                   # (BB, N, N)
        # kept x kept -> 0 ; otherwise -f32.max.  Adding -f32.max to O(1..100)
        # scores saturates to -f32.max in f32, so fully-masked rows end up uniform
        # after softmax — identical to torch's masked_fill_ behaviour.
        bias_sc[...] = jnp.where(pair > 0.0, 0.0, NEG_MAX)

    x = x_sc[...]                     # (M, C) f32
    bias = bias_sc[...]               # (BB, N, N) f32

    # packed per-layer vectors: [ln_pre_w, ln_pre_b, proj_b, ln1_w, ln1_b, b2]
    lvec = lvec_ref[0]                # (6, C)
    ln_pre_w, ln_pre_b = lvec[0:1], lvec[1:2]
    proj_b = lvec[2:3]
    ln1_w, ln1_b = lvec[3:4], lvec[4:5]
    b2 = lvec[5:6]

    # ---- masked multi-head self-attention on pre_norm(x) ----
    xn = _layernorm(x, ln_pre_w, ln_pre_b)
    xn_b = xn.astype(jnp.bfloat16)

    # fused QKV projection: (M, C) x (C, 3C); column layout = [Q | K | V], head-major
    qkv = jnp.dot(xn_b, wqkv_ref[0], preferred_element_type=jnp.float32)   # (M, 3C)

    heads = []
    for h in range(H):
        # fold softmax scale into q before the bf16 cast (scales M*dh, not M*N^2)
        qh = (qkv[:, h * dh:(h + 1) * dh] * scale).astype(jnp.bfloat16).reshape(BB, N, dh)
        kh = qkv[:, C + h * dh:C + (h + 1) * dh].astype(jnp.bfloat16).reshape(BB, N, dh)
        vh = qkv[:, 2 * C + h * dh:2 * C + (h + 1) * dh].astype(jnp.bfloat16).reshape(BB, N, dh)

        s = jnp.einsum('bqd,bkd->bqk', qh, kh,
                       preferred_element_type=jnp.float32) + bias          # (BB, N, N)
        s = s - jnp.max(s, axis=-1, keepdims=True)
        e = jnp.exp(s)
        p = e * pl.reciprocal(jnp.sum(e, axis=-1, keepdims=True), approx=True)
        heads.append(jnp.einsum('bqk,bkd->bqd', p.astype(jnp.bfloat16), vh,
                                preferred_element_type=jnp.float32))       # (BB, N, dh)

    attn_cat = jnp.concatenate(heads, axis=-1).reshape(M, C)               # (M, C) f32
    attn_out = jnp.dot(attn_cat.astype(jnp.bfloat16), wproj_ref[0],
                       preferred_element_type=jnp.float32) + proj_b

    # residual + norm1
    src = _layernorm(x + attn_out, ln1_w, ln1_b)

    # feed-forward: linear2(gelu(linear1(src)))
    h1 = _gelu_exact(jnp.dot(src.astype(jnp.bfloat16), w1_ref[0],
                             preferred_element_type=jnp.float32) + b1_ref[0])
    src2 = jnp.dot(h1.astype(jnp.bfloat16), w2_ref[0],
                   preferred_element_type=jnp.float32) + b2

    x_new = src + src2
    x_sc[...] = x_new

    # ---- classifier head (vectorized over the batch block), last layer only ----
    @pl.when(l == num_layers - 1)
    def _head():
        xf = _layernorm(x_new, normw_ref[...], normb_ref[...])             # (M, C)
        xe = xf.reshape(BB, N, C)
        # attention_pool: Linear(C, 1) -> softmax over tokens (torch dim=1, unmasked)
        logits = jnp.sum(xe * apw_ref[...], axis=-1, keepdims=True) + apb_ref[...]
        logits = logits - jnp.max(logits, axis=1, keepdims=True)
        w = jnp.exp(logits)
        w = w * pl.reciprocal(jnp.sum(w, axis=1, keepdims=True), approx=True)
        pooled = jnp.sum(w * xe, axis=1)                                   # (BB, C)
        out_ref[0] = (jnp.dot(pooled.astype(jnp.bfloat16), fcw_ref[...],
                              preferred_element_type=jnp.float32) + fcb_ref[...])


# ------------------------------- wrapper ------------------------------------

def masked_transformer_classifier(x, params, mask=None, *, num_heads, num_classes,
                                  num_batch_blocks=None):
    """x: (B, N, C) with N == seq_len + 1; mask: optional (B, N) bool."""
    B, N, C = x.shape
    L = params["wqkv"].shape[0]

    # One batch block per TensorCore: v5e/v6e have 1 TC -> 1 block (bigger M, better
    # MXU fill, weights DMA'd once).  On v7x (2 TCs) pass num_batch_blocks=2 so the
    # leading "parallel" axis is sharded across cores.
    if num_batch_blocks is None:
        num_batch_blocks = 1
    assert B % num_batch_blocks == 0
    BB = B // num_batch_blocks
    M = BB * N

    # positional embedding (sine, padded) added once, outside the layer loop
    x = (x + params["pos_emb"]).astype(jnp.float32)
    x_in = x.reshape(num_batch_blocks, M, C)

    if mask is None:
        mask_in = jnp.ones((num_batch_blocks, BB, N), jnp.float32)
    else:
        mask_in = mask.astype(jnp.float32).reshape(num_batch_blocks, BB, N)

    layer_keys = ["wqkv", "wproj", "w1", "w2", "lvec", "b1"]
    head_keys = ["norm_w", "norm_b", "ap_w", "ap_b", "fc_w", "fc_b"]
    layer_ws = [params[k] for k in layer_keys]
    head_ws = [params[k] for k in head_keys]

    def layer_spec(arr):
        """Per-layer stacked weight: block (1, *rest), indexed by the layer axis."""
        nd = arr.ndim
        return pl.BlockSpec((1,) + arr.shape[1:],
                            lambda b, l, _n=nd: (l,) + (0,) * (_n - 1))

    def const_spec(arr):
        """Head weight: one full block, resident for the whole grid."""
        nd = arr.ndim
        return pl.BlockSpec(arr.shape, lambda b, l, _n=nd: (0,) * _n)

    in_specs = (
        [pl.BlockSpec((1, M, C), lambda b, l: (b, 0, 0)),     # activations
         pl.BlockSpec((1, BB, N), lambda b, l: (b, 0, 0))]    # keep-mask
        + [layer_spec(w) for w in layer_ws]
        + [const_spec(w) for w in head_ws])

    # VMEM budget: ~75% of physical (≈96 MiB on 128-MiB chips, ≈48 MiB on v7x).
    try:
        vmem_cap = int(pltpu.get_tpu_info().vmem_capacity_bytes)
    except Exception:
        vmem_cap = 64 * 1024 * 1024
    vmem_limit = int(min((vmem_cap * 3) // 4, 100 * 1024 * 1024))

    out = pl.pallas_call(
        functools.partial(fused_forward_kernel, num_heads=num_heads,
                          tokens_per_sample=N),
        out_shape=jax.ShapeDtypeStruct((num_batch_blocks, BB, num_classes),
                                       jnp.float32),
        grid=(num_batch_blocks, L),
        in_specs=in_specs,
        out_specs=pl.BlockSpec((1, BB, num_classes), lambda b, l: (b, 0, 0)),
        scratch_shapes=[pltpu.VMEM((M, C), jnp.float32),      # resident activations
                        pltpu.VMEM((BB, N, N), jnp.float32)], # per-sample mask bias
        compiler_params=pltpu.CompilerParams(
            dimension_semantics=("parallel", "arbitrary"),
            vmem_limit_bytes=vmem_limit),
    )(x_in, mask_in, *layer_ws, *head_ws)

    return out.reshape(B, num_classes)


# ------------------------------ parameters ----------------------------------

def sinusoidal_embedding(n_channels, dim, padding_idx=True):
    pe = np.array([[p / 10000 ** (2 * (i // 2) / dim) for i in range(dim)]
                   for p in range(n_channels)], dtype=np.float32)
    pe[:, 0::2] = np.sin(pe[:, 0::2])
    pe[:, 1::2] = np.cos(pe[:, 1::2])
    pe = pe[None]                                                  # (1, n_channels, dim)
    if padding_idx:
        pe = np.concatenate([np.zeros((1, 1, dim), np.float32), pe], axis=1)
    return jnp.asarray(pe)


def init_params(key, *, embedding_dim, num_layers, num_heads, mlp_ratio,
                num_classes, seq_len):
    C = embedding_dim
    Fdim = int(C * mlp_ratio)
    L = num_layers

    def trunc_normal(k, shape, std=0.02):
        return std * jax.random.truncated_normal(k, -2.0, 2.0, shape, jnp.float32)

    keys = jax.random.split(key, L + 1)
    wqkv, wproj, w1, w2 = [], [], [], []
    for i in range(L):
        k = jax.random.split(keys[i], 4)
        # natural (in, out) layout; QKV columns ordered [Q | K | V], head-major inside
        wqkv.append(trunc_normal(k[0], (C, 3 * C)))
        wproj.append(trunc_normal(k[1], (C, C)))
        w1.append(trunc_normal(k[2], (C, Fdim)))
        w2.append(trunc_normal(k[3], (Fdim, C)))
    hk = jax.random.split(keys[-1], 2)

    ones_lc = jnp.ones((L, C), jnp.float32)
    zeros_lc = jnp.zeros((L, C), jnp.float32)
    # packed per-layer C-sized vectors: [ln_pre_w, ln_pre_b, proj_b, ln1_w, ln1_b, b2]
    lvec = jnp.stack([ones_lc, zeros_lc, zeros_lc, ones_lc, zeros_lc, zeros_lc], axis=1)

    return dict(
        pos_emb=sinusoidal_embedding(seq_len, C, padding_idx=True),   # (1, seq_len+1, C)
        wqkv=jnp.stack(wqkv).astype(jnp.bfloat16),     # (L, C, 3C)
        wproj=jnp.stack(wproj).astype(jnp.bfloat16),   # (L, C, C)
        w1=jnp.stack(w1).astype(jnp.bfloat16),         # (L, C, F)
        w2=jnp.stack(w2).astype(jnp.bfloat16),         # (L, F, C)
        lvec=lvec,                                     # (L, 6, C) f32
        b1=jnp.zeros((L, 1, Fdim), jnp.float32),       # (L, 1, F)
        norm_w=jnp.ones((1, C), jnp.float32), norm_b=jnp.zeros((1, C), jnp.float32),
        ap_w=trunc_normal(hk[0], (1, C)),              # attention_pool: Linear(C, 1)
        ap_b=jnp.zeros((1, 1), jnp.float32),
        fc_w=trunc_normal(hk[1], (C, num_classes)).astype(jnp.bfloat16),
        fc_b=jnp.zeros((1, num_classes), jnp.float32),
    )


# --------------------------------- main --------------------------------------

if __name__ == "__main__":
    B, SEQ_LEN, EMB = 2, 7, 64
    NUM_HEADS, NUM_LAYERS, MLP_RATIO, NUM_CLASSES = 4, 2, 2.0, 16
    N = SEQ_LEN + 1   # padded sinusoidal positional embedding => N tokens = seq_len + 1

    key = jax.random.PRNGKey(0)
    kx, kp = jax.random.split(key, 2)

    params = init_params(kp, embedding_dim=EMB, num_layers=NUM_LAYERS,
                         num_heads=NUM_HEADS, mlp_ratio=MLP_RATIO,
                         num_classes=NUM_CLASSES, seq_len=SEQ_LEN)

    x = jax.random.normal(kx, (B, N, EMB), jnp.float32)
    # deterministic boolean mask: last two tokens of batch element 1 are padding
    mask = jnp.ones((B, N), dtype=jnp.bool_).at[1, -2:].set(False)

    logits = masked_transformer_classifier(x, params, mask,
                                           num_heads=NUM_HEADS,
                                           num_classes=NUM_CLASSES)
    logits = jax.block_until_ready(logits)
    assert logits.shape == (B, NUM_CLASSES) and logits.dtype == jnp.float32
    assert bool(jnp.all(jnp.isfinite(logits)))
    print("KERNEL_OK")
</pallas_src>

<mosaic_0001>
module attributes {stable_mosaic.version = 11 : i64} {
  func.func @fused_forward_kernel(%arg0: i32, %arg1: i32, %arg2: memref<1x16x64xf32, #tpu.memory_space<vmem>>, %arg3: memref<1x2x8xf32, #tpu.memory_space<vmem>>, %arg4: memref<1x64x192xbf16, #tpu.memory_space<vmem>>, %arg5: memref<1x64x64xbf16, #tpu.memory_space<vmem>>, %arg6: memref<1x64x128xbf16, #tpu.memory_space<vmem>>, %arg7: memref<1x128x64xbf16, #tpu.memory_space<vmem>>, %arg8: memref<1x6x64xf32, #tpu.memory_space<vmem>>, %arg9: memref<1x1x128xf32, #tpu.memory_space<vmem>>, %arg10: memref<1x64xf32, #tpu.memory_space<vmem>>, %arg11: memref<1x64xf32, #tpu.memory_space<vmem>>, %arg12: memref<1x64xf32, #tpu.memory_space<vmem>>, %arg13: memref<1x1xf32, #tpu.memory_space<vmem>>, %arg14: memref<64x16xbf16, #tpu.memory_space<vmem>>, %arg15: memref<1x16xf32, #tpu.memory_space<vmem>>, %arg16: memref<1x2x16xf32, #tpu.memory_space<vmem>>, %arg17: memref<16x64xf32, #tpu.memory_space<vmem>>, %arg18: memref<2x8x8xf32, #tpu.memory_space<vmem>>) attributes {dimension_semantics = [#tpu.dimension_semantics<parallel>, #tpu.dimension_semantics<arbitrary>], iteration_bounds = array<i64: 1, 2>, scalar_prefetch = 0 : i64, scratch_operands = 2 : i64, tpu.core_type = #tpu.core_type<tc>, window_params = [{transform_indices = @transform_0, window_bounds = array<i64: 1, 16, 64>}, {transform_indices = @transform_1, window_bounds = array<i64: 1, 2, 8>}, {transform_indices = @transform_2, window_bounds = array<i64: 1, 64, 192>}, {transform_indices = @transform_3, window_bounds = array<i64: 1, 64, 64>}, {transform_indices = @transform_4, window_bounds = array<i64: 1, 64, 128>}, {transform_indices = @transform_5, window_bounds = array<i64: 1, 128, 64>}, {transform_indices = @transform_6, window_bounds = array<i64: 1, 6, 64>}, {transform_indices = @transform_7, window_bounds = array<i64: 1, 1, 128>}, {pipeline_mode = #tpu.pipeline_mode<synchronous>, transform_indices = @transform_8, window_bounds = array<i64: 1, 64>}, {pipeline_mode = #tpu.pipeline_mode<synchronous>, transform_indices = @transform_9, window_bounds = array<i64: 1, 64>}, {pipeline_mode = #tpu.pipeline_mode<synchronous>, transform_indices = @transform_10, window_bounds = array<i64: 1, 64>}, {pipeline_mode = #tpu.pipeline_mode<synchronous>, transform_indices = @transform_11, window_bounds = array<i64: 1, 1>}, {pipeline_mode = #tpu.pipeline_mode<synchronous>, transform_indices = @transform_12, window_bounds = array<i64: 64, 16>}, {pipeline_mode = #tpu.pipeline_mode<synchronous>, transform_indices = @transform_13, window_bounds = array<i64: 1, 16>}, {transform_indices = @transform_14, window_bounds = array<i64: 1, 2, 16>}]} {
    %c0_i32 = arith.constant 0 : i32
    %0 = arith.cmpi eq, %arg1, %c0_i32 : i32
    %1 = arith.extui %0 : i1 to i32
    %c0_i32_0 = arith.constant 0 : i32
    %2 = arith.cmpi ne, %1, %c0_i32_0 : i32
    scf.if %2 {
      %c0_62 = arith.constant 0 : index
      %c0_63 = arith.constant 0 : index
      %c0_64 = arith.constant 0 : index
      %197 = vector.load %arg2[%c0_62, %c0_63, %c0_64] : memref<1x16x64xf32, #tpu.memory_space<vmem>>, vector<1x16x64xf32>
      %198 = vector.shape_cast %197 : vector<1x16x64xf32> to vector<16x64xf32>
      %c0_65 = arith.constant 0 : index
      %c0_66 = arith.constant 0 : index
      %199 = vector.load %arg17[%c0_65, %c0_66] : memref<16x64xf32, #tpu.memory_space<vmem>>, vector<16x64xf32>
      tpu.vector_store %arg17[%c0_65, %c0_66], %198 {strides = array<i32>} : memref<16x64xf32, #tpu.memory_space<vmem>>, vector<16x64xf32>,
      %c0_67 = arith.constant 0 : index
      %c0_68 = arith.constant 0 : index
      %c0_69 = arith.constant 0 : index
      %200 = vector.load %arg3[%c0_67, %c0_68, %c0_69] : memref<1x2x8xf32, #tpu.memory_space<vmem>>, vector<1x2x8xf32>
      %201 = vector.shape_cast %200 : vector<1x2x8xf32> to vector<2x8xf32>
      %202 = vector.shape_cast %201 : vector<2x8xf32> to vector<2x8x1xf32>
      %203 = vector.shape_cast %201 : vector<2x8xf32> to vector<2x1x8xf32>
      %204 = vector.broadcast %202 : vector<2x8x1xf32> to vector<2x8x8xf32>
      %205 = vector.broadcast %203 : vector<2x1x8xf32> to vector<2x8x8xf32>
      %206 = arith.mulf %204, %205 : vector<2x8x8xf32>
      %cst_70 = arith.constant 0.000000e+00 : f32
      %207 = vector.broadcast %cst_70 : f32 to vector<2x8x8xf32>
      %208 = arith.cmpf ogt, %206, %207 : vector<2x8x8xf32>
      %cst_71 = arith.constant 0.000000e+00 : f32
      %cst_72 = arith.constant -3.40282347E+38 : f32
      %209 = vector.broadcast %cst_71 : f32 to vector<2x8x8xf32>
      %210 = vector.broadcast %cst_72 : f32 to vector<2x8x8xf32>
      %211 = arith.select %208, %209, %210 : vector<2x8x8xi1>, vector<2x8x8xf32>
      %c0_73 = arith.constant 0 : index
      %c0_74 = arith.constant 0 : index
      %c0_75 = arith.constant 0 : index
      %212 = vector.load %arg18[%c0_73, %c0_74, %c0_75] : memref<2x8x8xf32, #tpu.memory_space<vmem>>, vector<2x8x8xf32>
      tpu.vector_store %arg18[%c0_73, %c0_74, %c0_75], %211 {strides = array<i32>} : memref<2x8x8xf32, #tpu.memory_space<vmem>>, vector<2x8x8xf32>,
    } else {
    }
    %c0 = arith.constant 0 : index
    %c0_1 = arith.constant 0 : index
    %3 = vector.load %arg17[%c0, %c0_1] : memref<16x64xf32, #tpu.memory_space<vmem>>, vector<16x64xf32>
    %c0_2 = arith.constant 0 : index
    %c0_3 = arith.constant 0 : index
    %c0_4 = arith.constant 0 : index
    %4 = vector.load %arg18[%c0_2, %c0_3, %c0_4] : memref<2x8x8xf32, #tpu.memory_space<vmem>>, vector<2x8x8xf32>
    %c0_5 = arith.constant 0 : index
    %c0_6 = arith.constant 0 : index
    %c0_7 = arith.constant 0 : index
    %5 = vector.load %arg8[%c0_5, %c0_6, %c0_7] : memref<1x6x64xf32, #tpu.memory_space<vmem>>, vector<1x6x64xf32>
    %6 = vector.shape_cast %5 : vector<1x6x64xf32> to vector<6x64xf32>
    %7 = vector.extract_strided_slice %6 {offsets = [0, 0], sizes = [1, 64], strides = [1, 1]} : vector<6x64xf32> to vector<1x64xf32>
    %8 = vector.extract_strided_slice %6 {offsets = [1, 0], sizes = [1, 64], strides = [1, 1]} : vector<6x64xf32> to vector<1x64xf32>
    %9 = vector.extract_strided_slice %6 {offsets = [2, 0], sizes = [1, 64], strides = [1, 1]} : vector<6x64xf32> to vector<1x64xf32>
    %10 = vector.extract_strided_slice %6 {offsets = [3, 0], sizes = [1, 64], strides = [1, 1]} : vector<6x64xf32> to vector<1x64xf32>
    %11 = vector.extract_strided_slice %6 {offsets = [4, 0], sizes = [1, 64], strides = [1, 1]} : vector<6x64xf32> to vector<1x64xf32>
    %12 = vector.extract_strided_slice %6 {offsets = [5, 0], sizes = [1, 64], strides = [1, 1]} : vector<6x64xf32> to vector<1x64xf32>
    %cst = arith.constant dense<0.000000e+00> : vector<16xf32>
    %13 = vector.multi_reduction <add>, %3, %cst [1] : vector<16x64xf32> to vector<16xf32>
    %14 = vector.shape_cast %13 : vector<16xf32> to vector<16x1xf32>
    %cst_8 = arith.constant 6.400000e+01 : f32
    %15 = vector.broadcast %cst_8 : f32 to vector<16x1xf32>
    %16 = arith.divf %14, %15 : vector<16x1xf32>
    %17 = vector.broadcast %16 : vector<16x1xf32> to vector<16x64xf32>
    %18 = arith.subf %3, %17 : vector<16x64xf32>
    %19 = arith.mulf %18, %18 : vector<16x64xf32>
    %cst_9 = arith.constant dense<0.000000e+00> : vector<16xf32>
    %20 = vector.multi_reduction <add>, %19, %cst_9 [1] : vector<16x64xf32> to vector<16xf32>
    %21 = vector.shape_cast %20 : vector<16xf32> to vector<16x1xf32>
    %cst_10 = arith.constant 6.400000e+01 : f32
    %22 = vector.broadcast %cst_10 : f32 to vector<16x1xf32>
    %23 = arith.divf %21, %22 : vector<16x1xf32>
    %24 = vector.broadcast %16 : vector<16x1xf32> to vector<16x64xf32>
    %25 = arith.subf %3, %24 : vector<16x64xf32>
    %cst_11 = arith.constant 9.99999974E-6 : f32
    %26 = vector.broadcast %cst_11 : f32 to vector<16x1xf32>
    %27 = arith.addf %23, %26 : vector<16x1xf32>
    %28 = math.rsqrt %27 : vector<16x1xf32>
    %29 = vector.broadcast %28 : vector<16x1xf32> to vector<16x64xf32>
    %30 = arith.mulf %25, %29 : vector<16x64xf32>
    %31 = vector.broadcast %7 : vector<1x64xf32> to vector<16x64xf32>
    %32 = arith.mulf %30, %31 : vector<16x64xf32>
    %33 = vector.broadcast %8 : vector<1x64xf32> to vector<16x64xf32>
    %34 = arith.addf %32, %33 : vector<16x64xf32>
    %35 = arith.truncf %34 : vector<16x64xf32> to vector<16x64xbf16>
    %c0_12 = arith.constant 0 : index
    %c0_13 = arith.constant 0 : index
    %c0_14 = arith.constant 0 : index
    %36 = vector.load %arg4[%c0_12, %c0_13, %c0_14] : memref<1x64x192xbf16, #tpu.memory_space<vmem>>, vector<1x64x192xbf16>
    %37 = vector.shape_cast %36 : vector<1x64x192xbf16> to vector<64x192xbf16>
    %cst_15 = arith.constant dense<0.000000e+00> : vector<16x192xf32>
    %38 = tpu.matmul %35, %37, %cst_15 {dimension_numbers = #tpu.dot_dimension_numbers<[1], [0], [0], [1], [0, 0, 1, 1], [], []>} : vector<16x64xbf16>, vector<64x192xbf16>, vector<16x192xf32> -> vector<16x192xf32>
    %39 = vector.extract_strided_slice %38 {offsets = [0, 0], sizes = [16, 16], strides = [1, 1]} : vector<16x192xf32> to vector<16x16xf32>
    %cst_16 = arith.constant 2.500000e-01 : f32
    %40 = vector.broadcast %cst_16 : f32 to vector<16x16xf32>
    %41 = arith.mulf %39, %40 : vector<16x16xf32>
    %42 = arith.truncf %41 : vector<16x16xf32> to vector<16x16xbf16>
    %43 = vector.shape_cast %42 : vector<16x16xbf16> to vector<2x8x16xbf16>
    %44 = vector.extract_strided_slice %38 {offsets = [0, 64], sizes = [16, 16], strides = [1, 1]} : vector<16x192xf32> to vector<16x16xf32>
    %45 = arith.truncf %44 : vector<16x16xf32> to vector<16x16xbf16>
    %46 = vector.shape_cast %45 : vector<16x16xbf16> to vector<2x8x16xbf16>
    %47 = vector.extract_strided_slice %38 {offsets = [0, 128], sizes = [16, 16], strides = [1, 1]} : vector<16x192xf32> to vector<16x16xf32>
    %48 = arith.truncf %47 : vector<16x16xf32> to vector<16x16xbf16>
    %49 = vector.shape_cast %48 : vector<16x16xbf16> to vector<2x8x16xbf16>
    "tpu.trace_start"() <{level = 10 : i32, message = "bqd,bkd->bqk"}> : () -> ()
    %cst_17 = arith.constant dense<0.000000e+00> : vector<2x8x8xf32>
    %50 = tpu.matmul %43, %46, %cst_17 {dimension_numbers = #tpu.dot_dimension_numbers<[2], [2], [1], [1], [0, 0, 0, 1, 1, 1], [0], [0]>} : vector<2x8x16xbf16>, vector<2x8x16xbf16>, vector<2x8x8xf32> -> vector<2x8x8xf32>
    "tpu.trace_stop"() : () -> ()
    %51 = arith.addf %50, %4 : vector<2x8x8xf32>
    %cst_18 = arith.constant dense<0xFF800000> : vector<2x8xf32>
    %52 = vector.multi_reduction <maximumf>, %51, %cst_18 [2] : vector<2x8x8xf32> to vector<2x8xf32>
    %53 = vector.shape_cast %52 : vector<2x8xf32> to vector<2x8x1xf32>
    %54 = vector.broadcast %53 : vector<2x8x1xf32> to vector<2x8x8xf32>
    %55 = arith.subf %51, %54 : vector<2x8x8xf32>
    %56 = math.exp %55 : vector<2x8x8xf32>
    %cst_19 = arith.constant dense<0.000000e+00> : vector<2x8xf32>
    %57 = vector.multi_reduction <add>, %56, %cst_19 [2] : vector<2x8x8xf32> to vector<2x8xf32>
    %58 = vector.shape_cast %57 : vector<2x8xf32> to vector<2x8x1xf32>
    %59 = tpu.reciprocal %58 {approx = true} : vector<2x8x1xf32> -> vector<2x8x1xf32>
    %60 = vector.broadcast %59 : vector<2x8x1xf32> to vector<2x8x8xf32>
    %61 = arith.mulf %56, %60 : vector<2x8x8xf32>
    %62 = arith.truncf %61 : vector<2x8x8xf32> to vector<2x8x8xbf16>
    "tpu.trace_start"() <{level = 10 : i32, message = "bqk,bkd->bqd"}> : () -> ()
    %cst_20 = arith.constant dense<0.000000e+00> : vector<2x8x16xf32>
    %63 = tpu.matmul %62, %49, %cst_20 {dimension_numbers = #tpu.dot_dimension_numbers<[2], [1], [1], [2], [0, 0, 0, 1, 1, 2], [0], [0]>} : vector<2x8x8xbf16>, vector<2x8x16xbf16>, vector<2x8x16xf32> -> vector<2x8x16xf32>
    "tpu.trace_stop"() : () -> ()
    %64 = vector.extract_strided_slice %38 {offsets = [0, 16], sizes = [16, 16], strides = [1, 1]} : vector<16x192xf32> to vector<16x16xf32>
    %cst_21 = arith.constant 2.500000e-01 : f32
    %65 = vector.broadcast %cst_21 : f32 to vector<16x16xf32>
    %66 = arith.mulf %64, %65 : vector<16x16xf32>
    %67 = arith.truncf %66 : vector<16x16xf32> to vector<16x16xbf16>
    %68 = vector.shape_cast %67 : vector<16x16xbf16> to vector<2x8x16xbf16>
    %69 = vector.extract_strided_slice %38 {offsets = [0, 80], sizes = [16, 16], strides = [1, 1]} : vector<16x192xf32> to vector<16x16xf32>
    %70 = arith.truncf %69 : vector<16x16xf32> to vector<16x16xbf16>
    %71 = vector.shape_cast %70 : vector<16x16xbf16> to vector<2x8x16xbf16>
    %72 = vector.extract_strided_slice %38 {offsets = [0, 144], sizes = [16, 16], strides = [1, 1]} : vector<16x192xf32> to vector<16x16xf32>
    %73 = arith.truncf %72 : vector<16x16xf32> to vector<16x16xbf16>
    %74 = vector.shape_cast %73 : vector<16x16xbf16> to vector<2x8x16xbf16>
    "tpu.trace_start"() <{level = 10 : i32, message = "bqd,bkd->bqk"}> : () -> ()
    %cst_22 = arith.constant dense<0.000000e+00> : vector<2x8x8xf32>
    %75 = tpu.matmul %68, %71, %cst_22 {dimension_numbers = #tpu.dot_dimension_numbers<[2], [2], [1], [1], [0, 0, 0, 1, 1, 1], [0], [0]>} : vector<2x8x16xbf16>, vector<2x8x16xbf16>, vector<2x8x8xf32> -> vector<2x8x8xf32>
    "tpu.trace_stop"() : () -> ()
    %76 = arith.addf %75, %4 : vector<2x8x8xf32>
    %cst_23 = arith.constant dense<0xFF800000> : vector<2x8xf32>
    %77 = vector.multi_reduction <maximumf>, %76, %cst_23 [2] : vector<2x8x8xf32> to vector<2x8xf32>
    %78 = vector.shape_cast %77 : vector<2x8xf32> to vector<2x8x1xf32>
    %79 = vector.broadcast %78 : vector<2x8x1xf32> to vector<2x8x8xf32>
    %80 = arith.subf %76, %79 : vector<2x8x8xf32>
    %81 = math.exp %80 : vector<2x8x8xf32>
    %cst_24 = arith.constant dense<0.000000e+00> : vector<2x8xf32>
    %82 = vector.multi_reduction <add>, %81, %cst_24 [2] : vector<2x8x8xf32> to vector<2x8xf32>
    %83 = vector.shape_cast %82 : vector<2x8xf32> to vector<2x8x1xf32>
    %84 = tpu.reciprocal %83 {approx = true} : vector<2x8x1xf32> -> vector<2x8x1xf32>
    %85 = vector.broadcast %84 : vector<2x8x1xf32> to vector<2x8x8xf32>
    %86 = arith.mulf %81, %85 : vector<2x8x8xf32>
    %87 = arith.truncf %86 : vector<2x8x8xf32> to vector<2x8x8xbf16>
    "tpu.trace_start"() <{level = 10 : i32, message = "bqk,bkd->bqd"}> : () -> ()
    %cst_25 = arith.constant dense<0.000000e+00> : vector<2x8x16xf32>
    %88 = tpu.matmul %87, %74, %cst_25 {dimension_numbers = #tpu.dot_dimension_numbers<[2], [1], [1], [2], [0, 0, 0, 1, 1, 2], [0], [0]>} : vector<2x8x8xbf16>, vector<2x8x16xbf16>, vector<2x8x16xf32> -> vector<2x8x16xf32>
    "tpu.trace_stop"() : () -> ()
    %89 = vector.extract_strided_slice %38 {offsets = [0, 32], sizes = [16, 16], strides = [1, 1]} : vector<16x192xf32> to vector<16x16xf32>
    %cst_26 = arith.constant 2.500000e-01 : f32
    %90 = vector.broadcast %cst_26 : f32 to vector<16x16xf32>
    %91 = arith.mulf %89, %90 : vector<16x16xf32>
    %92 = arith.truncf %91 : vector<16x16xf32> to vector<16x16xbf16>
    %93 = vector.shape_cast %92 : vector<16x16xbf16> to vector<2x8x16xbf16>
    %94 = vector.extract_strided_slice %38 {offsets = [0, 96], sizes = [16, 16], strides = [1, 1]} : vector<16x192xf32> to vector<16x16xf32>
    %95 = arith.truncf %94 : vector<16x16xf32> to vector<16x16xbf16>
    %96 = vector.shape_cast %95 : vector<16x16xbf16> to vector<2x8x16xbf16>
    %97 = vector.extract_strided_slice %38 {offsets = [0, 160], sizes = [16, 16], strides = [1, 1]} : vector<16x192xf32> to vector<16x16xf32>
    %98 = arith.truncf %97 : vector<16x16xf32> to vector<16x16xbf16>
    %99 = vector.shape_cast %98 : vector<16x16xbf16> to vector<2x8x16xbf16>
    "tpu.trace_start"() <{level = 10 : i32, message = "bqd,bkd->bqk"}> : () -> ()
    %cst_27 = arith.constant dense<0.000000e+00> : vector<2x8x8xf32>
    %100 = tpu.matmul %93, %96, %cst_27 {dimension_numbers = #tpu.dot_dimension_numbers<[2], [2], [1], [1], [0, 0, 0, 1, 1, 1], [0], [0]>} : vector<2x8x16xbf16>, vector<2x8x16xbf16>, vector<2x8x8xf32> -> vector<2x8x8xf32>
    "tpu.trace_stop"() : () -> ()
    %101 = arith.addf %100, %4 : vector<2x8x8xf32>
    %cst_28 = arith.constant dense<0xFF800000> : vector<2x8xf32>
    %102 = vector.multi_reduction <maximumf>, %101, %cst_28 [2] : vector<2x8x8xf32> to vector<2x8xf32>
    %103 = vector.shape_cast %102 : vector<2x8xf32> to vector<2x8x1xf32>
    %104 = vector.broadcast %103 : vector<2x8x1xf32> to vector<2x8x8xf32>
    %105 = arith.subf %101, %104 : vector<2x8x8xf32>
    %106 = math.exp %105 : vector<2x8x8xf32>
    %cst_29 = arith.constant dense<0.000000e+00> : vector<2x8xf32>
    %107 = vector.multi_reduction <add>, %106, %cst_29 [2] : vector<2x8x8xf32> to vector<2x8xf32>
    %108 = vector.shape_cast %107 : vector<2x8xf32> to vector<2x8x1xf32>
    %109 = tpu.reciprocal %108 {approx = true} : vector<2x8x1xf32> -> vector<2x8x1xf32>
    %110 = vector.broadcast %109 : vector<2x8x1xf32> to vector<2x8x8xf32>
    %111 = arith.mulf %106, %110 : vector<2x8x8xf32>
    %112 = arith.truncf %111 : vector<2x8x8xf32> to vector<2x8x8xbf16>
    "tpu.trace_start"() <{level = 10 : i32, message = "bqk,bkd->bqd"}> : () -> ()
    %cst_30 = arith.constant dense<0.000000e+00> : vector<2x8x16xf32>
    %113 = tpu.matmul %112, %99, %cst_30 {dimension_numbers = #tpu.dot_dimension_numbers<[2], [1], [1], [2], [0, 0, 0, 1, 1, 2], [0], [0]>} : vector<2x8x8xbf16>, vector<2x8x16xbf16>, vector<2x8x16xf32> -> vector<2x8x16xf32>
    "tpu.trace_stop"() : () -> ()
    %114 = vector.extract_strided_slice %38 {offsets = [0, 48], sizes = [16, 16], strides = [1, 1]} : vector<16x192xf32> to vector<16x16xf32>
    %cst_31 = arith.constant 2.500000e-01 : f32
    %115 = vector.broadcast %cst_31 : f32 to vector<16x16xf32>
    %116 = arith.mulf %114, %115 : vector<16x16xf32>
    %117 = arith.truncf %116 : vector<16x16xf32> to vector<16x16xbf16>
    %118 = vector.shape_cast %117 : vector<16x16xbf16> to vector<2x8x16xbf16>
    %119 = vector.extract_strided_slice %38 {offsets = [0, 112], sizes = [16, 16], strides = [1, 1]} : vector<16x192xf32> to vector<16x16xf32>
    %120 = arith.truncf %119 : vector<16x16xf32> to vector<16x16xbf16>
    %121 = vector.shape_cast %120 : vector<16x16xbf16> to vector<2x8x16xbf16>
    %122 = vector.extract_strided_slice %38 {offsets = [0, 176], sizes = [16, 16], strides = [1, 1]} : vector<16x192xf32> to vector<16x16xf32>
    %123 = arith.truncf %122 : vector<16x16xf32> to vector<16x16xbf16>
    %124 = vector.shape_cast %123 : vector<16x16xbf16> to vector<2x8x16xbf16>
    "tpu.trace_start"() <{level = 10 : i32, message = "bqd,bkd->bqk"}> : () -> ()
    %cst_32 = arith.constant dense<0.000000e+00> : vector<2x8x8xf32>
    %125 = tpu.matmul %118, %121, %cst_32 {dimension_numbers = #tpu.dot_dimension_numbers<[2], [2], [1], [1], [0, 0, 0, 1, 1, 1], [0], [0]>} : vector<2x8x16xbf16>, vector<2x8x16xbf16>, vector<2x8x8xf32> -> vector<2x8x8xf32>
    "tpu.trace_stop"() : () -> ()
    %126 = arith.addf %125, %4 : vector<2x8x8xf32>
    %cst_33 = arith.constant dense<0xFF800000> : vector<2x8xf32>
    %127 = vector.multi_reduction <maximumf>, %126, %cst_33 [2] : vector<2x8x8xf32> to vector<2x8xf32>
    %128 = vector.shape_cast %127 : vector<2x8xf32> to vector<2x8x1xf32>
    %129 = vector.broadcast %128 : vector<2x8x1xf32> to vector<2x8x8xf32>
    %130 = arith.subf %126, %129 : vector<2x8x8xf32>
    %131 = math.exp %130 : vector<2x8x8xf32>
    %cst_34 = arith.constant dense<0.000000e+00> : vector<2x8xf32>
    %132 = vector.multi_reduction <add>, %131, %cst_34 [2] : vector<2x8x8xf32> to vector<2x8xf32>
    %133 = vector.shape_cast %132 : vector<2x8xf32> to vector<2x8x1xf32>
    %134 = tpu.reciprocal %133 {approx = true} : vector<2x8x1xf32> -> vector<2x8x1xf32>
    %135 = vector.broadcast %134 : vector<2x8x1xf32> to vector<2x8x8xf32>
    %136 = arith.mulf %131, %135 : vector<2x8x8xf32>
    %137 = arith.truncf %136 : vector<2x8x8xf32> to vector<2x8x8xbf16>
    "tpu.trace_start"() <{level = 10 : i32, message = "bqk,bkd->bqd"}> : () -> ()
    %cst_35 = arith.constant dense<0.000000e+00> : vector<2x8x16xf32>
    %138 = tpu.matmul %137, %124, %cst_35 {dimension_numbers = #tpu.dot_dimension_numbers<[2], [1], [1], [2], [0, 0, 0, 1, 1, 2], [0], [0]>} : vector<2x8x8xbf16>, vector<2x8x16xbf16>, vector<2x8x16xf32> -> vector<2x8x16xf32>
    "tpu.trace_stop"() : () -> ()
    %139 = tpu.concatenate %63, %88, %113, %138 in 2 : vector<2x8x16xf32>, vector<2x8x16xf32>, vector<2x8x16xf32>, vector<2x8x16xf32> -> vector<2x8x64xf32>
    %140 = vector.shape_cast %139 : vector<2x8x64xf32> to vector<16x64xf32>
    %141 = arith.truncf %140 : vector<16x64xf32> to vector<16x64xbf16>
    %c0_36 = arith.constant 0 : index
    %c0_37 = arith.constant 0 : index
    %c0_38 = arith.constant 0 : index
    %142 = vector.load %arg5[%c0_36, %c0_37, %c0_38] : memref<1x64x64xbf16, #tpu.memory_space<vmem>>, vector<1x64x64xbf16>
    %143 = vector.shape_cast %142 : vector<1x64x64xbf16> to vector<64x64xbf16>
    %cst_39 = arith.constant dense<0.000000e+00> : vector<16x64xf32>
    %144 = tpu.matmul %141, %143, %cst_39 {dimension_numbers = #tpu.dot_dimension_numbers<[1], [0], [0], [1], [0, 0, 1, 1], [], []>} : vector<16x64xbf16>, vector<64x64xbf16>, vector<16x64xf32> -> vector<16x64xf32>
    %145 = vector.broadcast %9 : vector<1x64xf32> to vector<16x64xf32>
    %146 = arith.addf %144, %145 : vector<16x64xf32>
    %147 = arith.addf %3, %146 : vector<16x64xf32>
    %cst_40 = arith.constant dense<0.000000e+00> : vector<16xf32>
    %148 = vector.multi_reduction <add>, %147, %cst_40 [1] : vector<16x64xf32> to vector<16xf32>
    %149 = vector.shape_cast %148 : vector<16xf32> to vector<16x1xf32>
    %cst_41 = arith.constant 6.400000e+01 : f32
    %150 = vector.broadcast %cst_41 : f32 to vector<16x1xf32>
    %151 = arith.divf %149, %150 : vector<16x1xf32>
    %152 = vector.broadcast %151 : vector<16x1xf32> to vector<16x64xf32>
    %153 = arith.subf %147, %152 : vector<16x64xf32>
    %154 = arith.mulf %153, %153 : vector<16x64xf32>
    %cst_42 = arith.constant dense<0.000000e+00> : vector<16xf32>
    %155 = vector.multi_reduction <add>, %154, %cst_42 [1] : vector<16x64xf32> to vector<16xf32>
    %156 = vector.shape_cast %155 : vector<16xf32> to vector<16x1xf32>
    %cst_43 = arith.constant 6.400000e+01 : f32
    %157 = vector.broadcast %cst_43 : f32 to vector<16x1xf32>
    %158 = arith.divf %156, %157 : vector<16x1xf32>
    %159 = vector.broadcast %151 : vector<16x1xf32> to vector<16x64xf32>
    %160 = arith.subf %147, %159 : vector<16x64xf32>
    %cst_44 = arith.constant 9.99999974E-6 : f32
    %161 = vector.broadcast %cst_44 : f32 to vector<16x1xf32>
    %162 = arith.addf %158, %161 : vector<16x1xf32>
    %163 = math.rsqrt %162 : vector<16x1xf32>
    %164 = vector.broadcast %163 : vector<16x1xf32> to vector<16x64xf32>
    %165 = arith.mulf %160, %164 : vector<16x64xf32>
    %166 = vector.broadcast %10 : vector<1x64xf32> to vector<16x64xf32>
    %167 = arith.mulf %165, %166 : vector<16x64xf32>
    %168 = vector.broadcast %11 : vector<1x64xf32> to vector<16x64xf32>
    %169 = arith.addf %167, %168 : vector<16x64xf32>
    %170 = arith.truncf %169 : vector<16x64xf32> to vector<16x64xbf16>
    %c0_45 = arith.constant 0 : index
    %c0_46 = arith.constant 0 : index
    %c0_47 = arith.constant 0 : index
    %171 = vector.load %arg6[%c0_45, %c0_46, %c0_47] : memref<1x64x128xbf16, #tpu.memory_space<vmem>>, vector<1x64x128xbf16>
    %172 = vector.shape_cast %171 : vector<1x64x128xbf16> to vector<64x128xbf16>
    %cst_48 = arith.constant dense<0.000000e+00> : vector<16x128xf32>
    %173 = tpu.matmul %170, %172, %cst_48 {dimension_numbers = #tpu.dot_dimension_numbers<[1], [0], [0], [1], [0, 0, 1, 1], [], []>} : vector<16x64xbf16>, vector<64x128xbf16>, vector<16x128xf32> -> vector<16x128xf32>
    %c0_49 = arith.constant 0 : index
    %c0_50 = arith.constant 0 : index
    %c0_51 = arith.constant 0 : index
    %174 = vector.load %arg9[%c0_49, %c0_50, %c0_51] : memref<1x1x128xf32, #tpu.memory_space<vmem>>, vector<1x1x128xf32>
    %175 = vector.shape_cast %174 : vector<1x1x128xf32> to vector<1x128xf32>
    %176 = vector.broadcast %175 : vector<1x128xf32> to vector<16x128xf32>
    %177 = arith.addf %173, %176 : vector<16x128xf32>
    %cst_52 = arith.constant 5.000000e-01 : f32
    %178 = vector.broadcast %cst_52 : f32 to vector<16x128xf32>
    %179 = arith.mulf %178, %177 : vector<16x128xf32>
    %cst_53 = arith.constant 0.707106769 : f32
    %180 = vector.broadcast %cst_53 : f32 to vector<16x128xf32>
    %181 = arith.mulf %177, %180 : vector<16x128xf32>
    %182 = math.erf %181 : vector<16x128xf32>
    %cst_54 = arith.constant 1.000000e+00 : f32
    %183 = vector.broadcast %cst_54 : f32 to vector<16x128xf32>
    %184 = arith.addf %183, %182 : vector<16x128xf32>
    %185 = arith.mulf %179, %184 : vector<16x128xf32>
    %186 = arith.truncf %185 : vector<16x128xf32> to vector<16x128xbf16>
    %c0_55 = arith.constant 0 : index
    %c0_56 = arith.constant 0 : index
    %c0_57 = arith.constant 0 : index
    %187 = vector.load %arg7[%c0_55, %c0_56, %c0_57] : memref<1x128x64xbf16, #tpu.memory_space<vmem>>, vector<1x128x64xbf16>
    %188 = vector.shape_cast %187 : vector<1x128x64xbf16> to vector<128x64xbf16>
    %cst_58 = arith.constant dense<0.000000e+00> : vector<16x64xf32>
    %189 = tpu.matmul %186, %188, %cst_58 {dimension_numbers = #tpu.dot_dimension_numbers<[1], [0], [0], [1], [0, 0, 1, 1], [], []>} : vector<16x128xbf16>, vector<128x64xbf16>, vector<16x64xf32> -> vector<16x64xf32>
    %190 = vector.broadcast %12 : vector<1x64xf32> to vector<16x64xf32>
    %191 = arith.addf %189, %190 : vector<16x64xf32>
    %192 = arith.addf %169, %191 : vector<16x64xf32>
    %c0_59 = arith.constant 0 : index
    %c0_60 = arith.constant 0 : index
    %193 = vector.load %arg17[%c0_59, %c0_60] : memref<16x64xf32, #tpu.memory_space<vmem>>, vector<16x64xf32>
    tpu.vector_store %arg17[%c0_59, %c0_60], %192 {strides = array<i32>} : memref<16x64xf32, #tpu.memory_space<vmem>>, vector<16x64xf32>,
    %c1_i32 = arith.constant 1 : i32
    %194 = arith.cmpi eq, %arg1, %c1_i32 : i32
    %195 = arith.extui %194 : i1 to i32
    %c0_i32_61 = arith.constant 0 : i32
    %196 = arith.cmpi ne, %195, %c0_i32_61 : i32
    scf.if %196 {
      %c0_62 = arith.constant 0 : index
      %c0_63 = arith.constant 0 : index
      %197 = vector.load %arg10[%c0_62, %c0_63] : memref<1x64xf32, #tpu.memory_space<vmem>>, vector<1x64xf32>
      %c0_64 = arith.constant 0 : index
      %c0_65 = arith.constant 0 : index
      %198 = vector.load %arg11[%c0_64, %c0_65] : memref<1x64xf32, #tpu.memory_space<vmem>>, vector<1x64xf32>
      %cst_66 = arith.constant dense<0.000000e+00> : vector<16xf32>
      %199 = vector.multi_reduction <add>, %192, %cst_66 [1] : vector<16x64xf32> to vector<16xf32>
      %200 = vector.shape_cast %199 : vector<16xf32> to vector<16x1xf32>
      %cst_67 = arith.constant 6.400000e+01 : f32
      %201 = vector.broadcast %cst_67 : f32 to vector<16x1xf32>
      %202 = arith.divf %200, %201 : vector<16x1xf32>
      %203 = vector.broadcast %202 : vector<16x1xf32> to vector<16x64xf32>
      %204 = arith.subf %192, %203 : vector<16x64xf32>
      %205 = arith.mulf %204, %204 : vector<16x64xf32>
      %cst_68 = arith.constant dense<0.000000e+00> : vector<16xf32>
      %206 = vector.multi_reduction <add>, %205, %cst_68 [1] : vector<16x64xf32> to vector<16xf32>
      %207 = vector.shape_cast %206 : vector<16xf32> to vector<16x1xf32>
      %cst_69 = arith.constant 6.400000e+01 : f32
      %208 = vector.broadcast %cst_69 : f32 to vector<16x1xf32>
      %209 = arith.divf %207, %208 : vector<16x1xf32>
      %210 = vector.broadcast %202 : vector<16x1xf32> to vector<16x64xf32>
      %211 = arith.subf %192, %210 : vector<16x64xf32>
      %cst_70 = arith.constant 9.99999974E-6 : f32
      %212 = vector.broadcast %cst_70 : f32 to vector<16x1xf32>
      %213 = arith.addf %209, %212 : vector<16x1xf32>
      %214 = math.rsqrt %213 : vector<16x1xf32>
      %215 = vector.broadcast %214 : vector<16x1xf32> to vector<16x64xf32>
      %216 = arith.mulf %211, %215 : vector<16x64xf32>
      %217 = vector.broadcast %197 : vector<1x64xf32> to vector<16x64xf32>
      %218 = arith.mulf %216, %217 : vector<16x64xf32>
      %219 = vector.broadcast %198 : vector<1x64xf32> to vector<16x64xf32>
      %220 = arith.addf %218, %219 : vector<16x64xf32>
      %221 = vector.shape_cast %220 : vector<16x64xf32> to vector<2x8x64xf32>
      %c0_71 = arith.constant 0 : index
      %c0_72 = arith.constant 0 : index
      %222 = vector.load %arg12[%c0_71, %c0_72] : memref<1x64xf32, #tpu.memory_space<vmem>>, vector<1x64xf32>
      %223 = vector.shape_cast %222 : vector<1x64xf32> to vector<1x1x64xf32>
      %224 = vector.broadcast %223 : vector<1x1x64xf32> to vector<2x8x64xf32>
      %225 = arith.mulf %221, %224 : vector<2x8x64xf32>
      %cst_73 = arith.constant dense<0.000000e+00> : vector<2x8xf32>
      %226 = vector.multi_reduction <add>, %225, %cst_73 [2] : vector<2x8x64xf32> to vector<2x8xf32>
      %227 = vector.shape_cast %226 : vector<2x8xf32> to vector<2x8x1xf32>
      %c0_74 = arith.constant 0 : index
      %c0_75 = arith.constant 0 : index
      %228 = vector.load %arg13[%c0_74, %c0_75] : memref<1x1xf32, #tpu.memory_space<vmem>>, vector<1x1xf32>
      %229 = vector.shape_cast %228 : vector<1x1xf32> to vector<1x1x1xf32>
      %230 = vector.broadcast %229 : vector<1x1x1xf32> to vector<2x8x1xf32>
      %231 = arith.addf %227, %230 : vector<2x8x1xf32>
      %cst_76 = arith.constant dense<0xFF800000> : vector<2x1xf32>
      %232 = vector.multi_reduction <maximumf>, %231, %cst_76 [1] : vector<2x8x1xf32> to vector<2x1xf32>
      %233 = vector.shape_cast %232 : vector<2x1xf32> to vector<2x1x1xf32>
      %234 = vector.broadcast %233 : vector<2x1x1xf32> to vector<2x8x1xf32>
      %235 = arith.subf %231, %234 : vector<2x8x1xf32>
      %236 = math.exp %235 : vector<2x8x1xf32>
      %cst_77 = arith.constant dense<0.000000e+00> : vector<2x1xf32>
      %237 = vector.multi_reduction <add>, %236, %cst_77 [1] : vector<2x8x1xf32> to vector<2x1xf32>
      %238 = vector.shape_cast %237 : vector<2x1xf32> to vector<2x1x1xf32>
      %239 = tpu.reciprocal %238 {approx = true} : vector<2x1x1xf32> -> vector<2x1x1xf32>
      %240 = vector.broadcast %239 : vector<2x1x1xf32> to vector<2x8x1xf32>
      %241 = arith.mulf %236, %240 : vector<2x8x1xf32>
      %242 = vector.broadcast %241 : vector<2x8x1xf32> to vector<2x8x64xf32>
      %243 = arith.mulf %242, %221 : vector<2x8x64xf32>
      %cst_78 = arith.constant dense<0.000000e+00> : vector<2x64xf32>
      %244 = vector.multi_reduction <add>, %243, %cst_78 [1] : vector<2x8x64xf32> to vector<2x64xf32>
      %245 = arith.truncf %244 : vector<2x64xf32> to vector<2x64xbf16>
      %c0_79 = arith.constant 0 : index
      %c0_80 = arith.constant 0 : index
      %246 = vector.load %arg14[%c0_79, %c0_80] : memref<64x16xbf16, #tpu.memory_space<vmem>>, vector<64x16xbf16>
      %cst_81 = arith.constant dense<0.000000e+00> : vector<2x16xf32>
      %247 = tpu.matmul %245, %246, %cst_81 {dimension_numbers = #tpu.dot_dimension_numbers<[1], [0], [0], [1], [0, 0, 1, 1], [], []>} : vector<2x64xbf16>, vector<64x16xbf16>, vector<2x16xf32> -> vector<2x16xf32>
      %c0_82 = arith.constant 0 : index
      %c0_83 = arith.constant 0 : index
      %248 = vector.load %arg15[%c0_82, %c0_83] : memref<1x16xf32, #tpu.memory_space<vmem>>, vector<1x16xf32>
      %249 = vector.broadcast %248 : vector<1x16xf32> to vector<2x16xf32>
      %250 = arith.addf %247, %249 : vector<2x16xf32>
      %c0_84 = arith.constant 0 : index
      %c0_85 = arith.constant 0 : index
      %c0_86 = arith.constant 0 : index
      %251 = vector.load %arg16[%c0_84, %c0_85, %c0_86] : memref<1x2x16xf32, #tpu.memory_space<vmem>>, vector<1x2x16xf32>
      %252 = vector.shape_cast %251 : vector<1x2x16xf32> to vector<2x16xf32>
      %253 = vector.shape_cast %250 : vector<2x16xf32> to vector<1x2x16xf32>
      tpu.vector_store %arg16[%c0_84, %c0_85, %c0_86], %253 {strides = array<i32>} : memref<1x2x16xf32, #tpu.memory_space<vmem>>, vector<1x2x16xf32>,
    } else {
    }
    return
  }
  func.func @transform_0(%arg0: i32, %arg1: i32) -> (i32, i32, i32) {
    %c0_i32 = arith.constant 0 : i32
    %c0_i32_0 = arith.constant 0 : i32
    %c0_i32_1 = arith.constant 0 : i32
    return %arg0, %c0_i32, %c0_i32_0 : i32, i32, i32
  }
  func.func @transform_1(%arg0: i32, %arg1: i32) -> (i32, i32, i32) {
    %c0_i32 = arith.constant 0 : i32
    %c0_i32_0 = arith.constant 0 : i32
    %c0_i32_1 = arith.constant 0 : i32
    return %arg0, %c0_i32, %c0_i32_0 : i32, i32, i32
  }
  func.func @transform_2(%arg0: i32, %arg1: i32) -> (i32, i32, i32) {
    %c0_i32 = arith.constant 0 : i32
    %c0_i32_0 = arith.constant 0 : i32
    %c0_i32_1 = arith.constant 0 : i32
    return %arg1, %c0_i32, %c0_i32_0 : i32, i32, i32
  }
  func.func @transform_3(%arg0: i32, %arg1: i32) -> (i32, i32, i32) {
    %c0_i32 = arith.constant 0 : i32
    %c0_i32_0 = arith.constant 0 : i32
    %c0_i32_1 = arith.constant 0 : i32
    return %arg1, %c0_i32, %c0_i32_0 : i32, i32, i32
  }
  func.func @transform_4(%arg0: i32, %arg1: i32) -> (i32, i32, i32) {
    %c0_i32 = arith.constant 0 : i32
    %c0_i32_0 = arith.constant 0 : i32
    %c0_i32_1 = arith.constant 0 : i32
    return %arg1, %c0_i32, %c0_i32_0 : i32, i32, i32
  }
  func.func @transform_5(%arg0: i32, %arg1: i32) -> (i32, i32, i32) {
    %c0_i32 = arith.constant 0 : i32
    %c0_i32_0 = arith.constant 0 : i32
    %c0_i32_1 = arith.constant 0 : i32
    return %arg1, %c0_i32, %c0_i32_0 : i32, i32, i32
  }
  func.func @transform_6(%arg0: i32, %arg1: i32) -> (i32, i32, i32) {
    %c0_i32 = arith.constant 0 : i32
    %c0_i32_0 = arith.constant 0 : i32
    %c0_i32_1 = arith.constant 0 : i32
    return %arg1, %c0_i32, %c0_i32_0 : i32, i32, i32
  }
  func.func @transform_7(%arg0: i32, %arg1: i32) -> (i32, i32, i32) {
    %c0_i32 = arith.constant 0 : i32
    %c0_i32_0 = arith.constant 0 : i32
    %c0_i32_1 = arith.constant 0 : i32
    return %arg1, %c0_i32, %c0_i32_0 : i32, i32, i32
  }
  func.func @transform_8(%arg0: i32, %arg1: i32) -> (i32, i32) {
    %c0_i32 = arith.constant 0 : i32
    %c0_i32_0 = arith.constant 0 : i32
    %c0_i32_1 = arith.constant 0 : i32
    return %c0_i32, %c0_i32_0 : i32, i32
  }
  func.func @transform_9(%arg0: i32, %arg1: i32) -> (i32, i32) {
    %c0_i32 = arith.constant 0 : i32
    %c0_i32_0 = arith.constant 0 : i32
    %c0_i32_1 = arith.constant 0 : i32
    return %c0_i32, %c0_i32_0 : i32, i32
  }
  func.func @transform_10(%arg0: i32, %arg1: i32) -> (i32, i32) {
    %c0_i32 = arith.constant 0 : i32
    %c0_i32_0 = arith.constant 0 : i32
    %c0_i32_1 = arith.constant 0 : i32
    return %c0_i32, %c0_i32_0 : i32, i32
  }
  func.func @transform_11(%arg0: i32, %arg1: i32) -> (i32, i32) {
    %c0_i32 = arith.constant 0 : i32
    %c0_i32_0 = arith.constant 0 : i32
    %c0_i32_1 = arith.constant 0 : i32
    return %c0_i32, %c0_i32_0 : i32, i32
  }
  func.func @transform_12(%arg0: i32, %arg1: i32) -> (i32, i32) {
    %c0_i32 = arith.constant 0 : i32
    %c0_i32_0 = arith.constant 0 : i32
    %c0_i32_1 = arith.constant 0 : i32
    return %c0_i32, %c0_i32_0 : i32, i32
  }
  func.func @transform_13(%arg0: i32, %arg1: i32) -> (i32, i32) {
    %c0_i32 = arith.constant 0 : i32
    %c0_i32_0 = arith.constant 0 : i32
    %c0_i32_1 = arith.constant 0 : i32
    return %c0_i32, %c0_i32_0 : i32, i32
  }
  func.func @transform_14(%arg0: i32, %arg1: i32) -> (i32, i32, i32) {
    %c0_i32 = arith.constant 0 : i32
    %c0_i32_0 = arith.constant 0 : i32
    %c0_i32_1 = arith.constant 0 : i32
    return %arg0, %c0_i32, %c0_i32_0 : i32, i32, i32
  }
}

</mosaic_0001>

<llo_original>
// kernel: tpu_custom_call.1
$region0: #{tpu_custom_call.1}
  #allocation0 [shape = 'u32[]', space=smem, size = 0x4, offset = 0x4, fixed_abs, tag = 'smem constant byte address 0x4 - core index']
  #allocation1 [shape = 'u32[144,128]{1,0:T(1,128)}', space=vmem, size = 0x12000, scoped, tag = 'internal scratch']
  #allocation2 [shape = 'f32[16,64]{1,0:T(8,128)}', space=vmem, size = 0x2000, scoped, tag = 'scratch operand']
  #allocation3 [shape = 'f32[2,8,8]{2,1,0:T(8,128)}', space=vmem, size = 0x2000, scoped, tag = 'scratch operand']
  #allocation4 [shape = 'f32[1,1]{1,0:T(1,128)S(1)}', space=vmem, size = 0x200, scoped, tag = 'scoped memory for tpu_custom_call.1']
  %s0 = inlined_call_operand.vmem [shape: f32[1,16,64], index: 0, kind: input, shape index: {}]
  %s1 = inlined_call_operand.vmem [shape: f32[1,2,8], index: 1, kind: input, shape index: {}]
  %s2 = inlined_call_operand.vmem [shape: bf16[2,64,192], index: 2, kind: input, shape index: {}]
  %s3 = inlined_call_operand.vmem [shape: bf16[2,64,64], index: 3, kind: input, shape index: {}]
  %s4 = inlined_call_operand.hbm [shape: bf16[2,64,128], index: 4, kind: input, shape index: {}]
  %s5 = inlined_call_operand.vmem [shape: bf16[2,128,64], index: 5, kind: input, shape index: {}]
  %s6 = inlined_call_operand.vmem [shape: f32[2,6,64], index: 6, kind: input, shape index: {}]
  %s7 = inlined_call_operand.hbm [shape: f32[2,1,128], index: 7, kind: input, shape index: {}]
  %s8 = inlined_call_operand.hbm [shape: f32[1,64], index: 8, kind: input, shape index: {}]
  %s9 = inlined_call_operand.vmem [shape: f32[1,64], index: 9, kind: input, shape index: {}]
  %s10 = inlined_call_operand.vmem [shape: f32[1,64], index: 10, kind: input, shape index: {}]
  %s11 = inlined_call_operand.<no memory space> [shape: f32[1,1], index: 11, kind: input, shape index: {}]
  %s12 = inlined_call_operand.vmem [shape: bf16[64,16], index: 12, kind: input, shape index: {}]
  %s13 = inlined_call_operand.vmem [shape: f32[1,16], index: 13, kind: input, shape index: {}]
  %s14 = inlined_call_operand.hbm [shape: f32[1,2,16], index: 14, kind: output, shape index: {}]
  %s15 = sld [smem:[#allocation0]]
  $region109: #{tpu_custom_call.1} parent=0
    _
  %s17 = ssub.s32 1, %s15
  %s18 = scalar_select 0, %s17, %s15
  %v19 = vstv %s11
  %20 = vst [vmem:[#allocation4] sm:$0x1] %v19
  $region1: #{tpu_custom_call.1} parent=0
    #allocation5 [shape = 'u8[32768]{0}', space=vmem, size = 0x8000, scoped, tag = 'input window, operand 4']
    #allocation6 [shape = 's32[2]{0}', space=sflag, size = 0x8, scoped, tag = 'scoped memory for tpu_custom_call.1']
    #allocation7 [shape = 's32[2]{0}', space=sflag, size = 0x8, scoped, tag = 'scoped memory for tpu_custom_call.1']
    #allocation8 [shape = 'u8[1024]{0}', space=vmem, size = 0x400, scoped, tag = 'input window, operand 7']
    #allocation9 [shape = 's32[2]{0}', space=sflag, size = 0x8, scoped, tag = 'scoped memory for tpu_custom_call.1']
    #allocation10 [shape = 'u8[512]{0}', space=vmem, size = 0x400, scoped, tag = 'input window, operand 8, single buffered']
    #allocation11 [shape = 'u8[1024]{0}', space=vmem, size = 0x400, scoped, tag = 'output window, operand 0, single buffered']
    %21 = vsyncpa [#allocation6], 0
    %s22 = scalar_lea.sflag [#allocation6], 1
    %23 = vsyncpa %s22, 0
    %24 = vsyncpa [#allocation9], 0
    %s25 = scalar_lea.sflag [#allocation9], 1
    %26 = vsyncpa %s25, 0
    %27 = vsyncpa [#allocation7], 0
    loop: start=0, step=1, limit=4
    $region2: #{tpu_custom_call.1} parent=1 // loop_pre_header
      _
    $region3: #{tpu_custom_call.1} parent=1 // loop_header
      %s29 = sphi 0, %s33
      %p30 = scmp.ge.s32.totalorder %s29, 4
      %s36 = sphi 0, %s48
      %s37 = sphi 0, %s44
      %s38 = sphi 0, %s36
      %s39 = sphi 0, %s37
      %s40 = sphi 0, %s38
      %s41 = sphi 0, %s39
      %s51 = sphi 0, %s53
      %s54 = sphi 0, %s51
      %s55 = sphi 0, %s54
      %s71 = sphi 0, %s55
      %s77 = sphi 0, %s79
      %s80 = sphi 0, %s77
      %s81 = sphi 0, %s80
      %s97 = sphi 0, %s81
      %s103 = sphi 0, %s105
      %s106 = sphi 0, %s103
      %s107 = sphi 0, %s106
      %s123 = sphi 0, %s107
      %s129 = sphi 0, %s131
      %s132 = sphi 0, %s129
      %s133 = sphi 0, %s132
      %s149 = sphi 0, %s133
      %s155 = sphi 0, %s157
      %s158 = sphi 0, %s155
      %s159 = sphi 0, %s158
      %s175 = sphi 0, %s159
      %s181 = sphi 0, %s183
      %s184 = sphi 0, %s181
      %s185 = sphi 0, %s184
      %s201 = sphi 0, %s185
      %s207 = sphi 0, %s209
      %s210 = sphi 0, %s207
      %s211 = sphi 0, %s210
      %s227 = sphi 0, %s211
      %s233 = sphi 0, %s235
      %s236 = sphi 0, %s233
      %s237 = sphi 0, %s236
      %s253 = sphi 0, %s237
      %s257 = sphi 0, %s257
      %s259 = sphi 0, %s257
      %s260 = sphi 0, %s259
      %s274 = sphi 0, %s260
      %s278 = sphi 0, %s278
      %s280 = sphi 0, %s278
      %s281 = sphi 0, %s280
      %s295 = sphi 0, %s281
      %s299 = sphi 0, %s299
      %s301 = sphi 0, %s299
      %s302 = sphi 0, %s301
      %s316 = sphi 0, %s302
      %s320 = sphi 0, %s320
      %s322 = sphi 0, %s320
      %s323 = sphi 0, %s322
      %s337 = sphi 0, %s323
      %s341 = sphi 0, %s341
      %s343 = sphi 0, %s341
      %s344 = sphi 0, %s343
      %s358 = sphi 0, %s344
      %s362 = sphi 0, %s362
      %s364 = sphi 0, %s362
      %s365 = sphi 0, %s364
      %s379 = sphi 0, %s365
      %s385 = sphi 0, %s387
      %s388 = sphi 0, %s385
      %s389 = sphi 0, %s388
      %s405 = sphi 0, %s389
    $region4: #{tpu_custom_call.1} parent=1 // loop_header_branch
      %32 = sbr.rel (%p30) target = $region8
    $region5: #{tpu_custom_call.1} parent=1 // loop_body
      %s34 = ssub.s32 %s29, 1
      %s35 = ssub.s32 %s29, 2
      %s42 = sadd.s32 1, %s37
      %p43 = scmp.ge.s32.totalorder %s42, 2
      %s44 = scalar_select %p43, 0, %s42
      %s45 = sadd.s32 1, %s36
      %s46 = scalar_select %p43, %s45, %s36
      %p47 = scmp.ge.s32.totalorder %s46, 1
      %s48 = scalar_select %p47, 0, %s46
      %s49 = ssub.s32 %s36, %s48
      %p50 = scmp.eq.s32.totalorder %s49, 0
      %s52 = sadd.s32 %s51, 1
      %s53 = scalar_select %p50, %s51, %s52
      %p56 = pneg %p50
      %p57 = scmp.eq.s32.totalorder %s29, 1
      %p58 = por %p56, %p57
      %p59 = scmp.ne.s32.totalorder %s51, %s54
      %p60 = scmp.eq.s32.totalorder %s29, 0
      %p61 = por %p59, %p60
      %p62 = scmp.ne.s32.totalorder %s51, %s54
      %p63 = scmp.eq.s32.totalorder %s34, 1
      %p64 = por %p62, %p63
      %p65 = scmp.ne.s32.totalorder %s54, %s55
      %p66 = scmp.eq.s32.totalorder %s34, 0
      %p67 = por %p65, %p66
      %p68 = scmp.ne.s32.totalorder %s54, %s55
      %p69 = scmp.eq.s32.totalorder %s35, 1
      %p70 = por %p68, %p69
      %p72 = scmp.ne.s32.totalorder %s55, %s71
      %p73 = scmp.eq.s32.totalorder %s35, 0
      %p74 = por %p72, %p73
      %s75 = ssub.s32 %s36, %s48
      %p76 = scmp.eq.s32.totalorder %s75, 0
      %s78 = sadd.s32 %s77, 1
      %s79 = scalar_select %p76, %s77, %s78
      %p82 = pneg %p76
      %p83 = scmp.eq.s32.totalorder %s29, 1
      %p84 = por %p82, %p83
      %p85 = scmp.ne.s32.totalorder %s77, %s80
      %p86 = scmp.eq.s32.totalorder %s29, 0
      %p87 = por %p85, %p86
      %p88 = scmp.ne.s32.totalorder %s77, %s80
      %p89 = scmp.eq.s32.totalorder %s34, 1
      %p90 = por %p88, %p89
      %p91 = scmp.ne.s32.totalorder %s80, %s81
      %p92 = scmp.eq.s32.totalorder %s34, 0
      %p93 = por %p91, %p92
      %p94 = scmp.ne.s32.totalorder %s80, %s81
      %p95 = scmp.eq.s32.totalorder %s35, 1
      %p96 = por %p94, %p95
      %p98 = scmp.ne.s32.totalorder %s81, %s97
      %p99 = scmp.eq.s32.totalorder %s35, 0
      %p100 = por %p98, %p99
      %s101 = ssub.s32 %s37, %s44
      %p102 = scmp.eq.s32.totalorder %s101, 0
      %s104 = sadd.s32 %s103, 1
      %s105 = scalar_select %p102, %s103, %s104
      %p108 = pneg %p102
      %p109 = scmp.eq.s32.totalorder %s29, 1
      %p110 = por %p108, %p109
      %p111 = scmp.ne.s32.totalorder %s103, %s106
      %p112 = scmp.eq.s32.totalorder %s29, 0
      %p113 = por %p111, %p112
      %p114 = scmp.ne.s32.totalorder %s103, %s106
      %p115 = scmp.eq.s32.totalorder %s34, 1
      %p116 = por %p114, %p115
      %p117 = scmp.ne.s32.totalorder %s106, %s107
      %p118 = scmp.eq.s32.totalorder %s34, 0
      %p119 = por %p117, %p118
      %p120 = scmp.ne.s32.totalorder %s106, %s107
      %p121 = scmp.eq.s32.totalorder %s35, 1
      %p122 = por %p120, %p121
      %p124 = scmp.ne.s32.totalorder %s107, %s123
      %p125 = scmp.eq.s32.totalorder %s35, 0
      %p126 = por %p124, %p125
      %s127 = ssub.s32 %s37, %s44
      %p128 = scmp.eq.s32.totalorder %s127, 0
      %s130 = sadd.s32 %s129, 1
      %s131 = scalar_select %p128, %s129, %s130
      %p134 = pneg %p128
      %p135 = scmp.eq.s32.totalorder %s29, 1
      %p136 = por %p134, %p135
      %p137 = scmp.ne.s32.totalorder %s129, %s132
      %p138 = scmp.eq.s32.totalorder %s29, 0
      %p139 = por %p137, %p138
      %p140 = scmp.ne.s32.totalorder %s129, %s132
      %p141 = scmp.eq.s32.totalorder %s34, 1
      %p142 = por %p140, %p141
      %p143 = scmp.ne.s32.totalorder %s132, %s133
      %p144 = scmp.eq.s32.totalorder %s34, 0
      %p145 = por %p143, %p144
      %p146 = scmp.ne.s32.totalorder %s132, %s133
      %p147 = scmp.eq.s32.totalorder %s35, 1
      %p148 = por %p146, %p147
      %p150 = scmp.ne.s32.totalorder %s133, %s149
      %p151 = scmp.eq.s32.totalorder %s35, 0
      %p152 = por %p150, %p151
      %s153 = ssub.s32 %s37, %s44
      %p154 = scmp.eq.s32.totalorder %s153, 0
      %s156 = sadd.s32 %s155, 1
      %s157 = scalar_select %p154, %s155, %s156
      %p160 = pneg %p154
      %p161 = scmp.eq.s32.totalorder %s29, 1
      %p162 = por %p160, %p161
      %p163 = scmp.ne.s32.totalorder %s155, %s158
      %p164 = scmp.eq.s32.totalorder %s29, 0
      %p165 = por %p163, %p164
      %p166 = scmp.ne.s32.totalorder %s155, %s158
      %p167 = scmp.eq.s32.totalorder %s34, 1
      %p168 = por %p166, %p167
      %p169 = scmp.ne.s32.totalorder %s158, %s159
      %p170 = scmp.eq.s32.totalorder %s34, 0
      %p171 = por %p169, %p170
      %p172 = scmp.ne.s32.totalorder %s158, %s159
      %p173 = scmp.eq.s32.totalorder %s35, 1
      %p174 = por %p172, %p173
      %p176 = scmp.ne.s32.totalorder %s159, %s175
      %p177 = scmp.eq.s32.totalorder %s35, 0
      %p178 = por %p176, %p177
      %s179 = ssub.s32 %s37, %s44
      %p180 = scmp.eq.s32.totalorder %s179, 0
      %s182 = sadd.s32 %s181, 1
      %s183 = scalar_select %p180, %s181, %s182
      %p186 = pneg %p180
      %p187 = scmp.eq.s32.totalorder %s29, 1
      %p188 = por %p186, %p187
      %p189 = scmp.ne.s32.totalorder %s181, %s184
      %p190 = scmp.eq.s32.totalorder %s29, 0
      %p191 = por %p189, %p190
      %p192 = scmp.ne.s32.totalorder %s181, %s184
      %p193 = scmp.eq.s32.totalorder %s34, 1
      %p194 = por %p192, %p193
      %p195 = scmp.ne.s32.totalorder %s184, %s185
      %p196 = scmp.eq.s32.totalorder %s34, 0
      %p197 = por %p195, %p196
      %p198 = scmp.ne.s32.totalorder %s184, %s185
      %p199 = scmp.eq.s32.totalorder %s35, 1
      %p200 = por %p198, %p199
      %p202 = scmp.ne.s32.totalorder %s185, %s201
      %p203 = scmp.eq.s32.totalorder %s35, 0
      %p204 = por %p202, %p203
      %s205 = ssub.s32 %s37, %s44
      %p206 = scmp.eq.s32.totalorder %s205, 0
      %s208 = sadd.s32 %s207, 1
      %s209 = scalar_select %p206, %s207, %s208
      %p212 = pneg %p206
      %p213 = scmp.eq.s32.totalorder %s29, 1
      %p214 = por %p212, %p213
      %p215 = scmp.ne.s32.totalorder %s207, %s210
      %p216 = scmp.eq.s32.totalorder %s29, 0
      %p217 = por %p215, %p216
      %p218 = scmp.ne.s32.totalorder %s207, %s210
      %p219 = scmp.eq.s32.totalorder %s34, 1
      %p220 = por %p218, %p219
      %p221 = scmp.ne.s32.totalorder %s210, %s211
      %p222 = scmp.eq.s32.totalorder %s34, 0
      %p223 = por %p221, %p222
      %p224 = scmp.ne.s32.totalorder %s210, %s211
      %p225 = scmp.eq.s32.totalorder %s35, 1
      %p226 = por %p224, %p225
      %p228 = scmp.ne.s32.totalorder %s211, %s227
      %p229 = scmp.eq.s32.totalorder %s35, 0
      %p230 = por %p228, %p229
      %s231 = ssub.s32 %s37, %s44
      %p232 = scmp.eq.s32.totalorder %s231, 0
      %s234 = sadd.s32 %s233, 1
      %s235 = scalar_select %p232, %s233, %s234
      %p238 = pneg %p232
      %p239 = scmp.eq.s32.totalorder %s29, 1
      %p240 = por %p238, %p239
      %p241 = scmp.ne.s32.totalorder %s233, %s236
      %p242 = scmp.eq.s32.totalorder %s29, 0
      %p243 = por %p241, %p242
      %p244 = scmp.ne.s32.totalorder %s233, %s236
      %p245 = scmp.eq.s32.totalorder %s34, 1
      %p246 = por %p244, %p245
      %p247 = scmp.ne.s32.totalorder %s236, %s237
      %p248 = scmp.eq.s32.totalorder %s34, 0
      %p249 = por %p247, %p248
      %p250 = scmp.ne.s32.totalorder %s236, %s237
      %p251 = scmp.eq.s32.totalorder %s35, 1
      %p252 = por %p250, %p251
      %p254 = scmp.ne.s32.totalorder %s237, %s253
      %p255 = scmp.eq.s32.totalorder %s35, 0
      %p256 = por %p254, %p255
      %s258 = sadd.s32 %s257, 1
      %p261 = scmp.eq.s32.totalorder %s29, 1
      %p262 = scmp.ne.s32.totalorder %s257, %s259
      %p263 = scmp.eq.s32.totalorder %s29, 0
      %p264 = por %p262, %p263
      %p265 = scmp.ne.s32.totalorder %s257, %s259
      %p266 = scmp.eq.s32.totalorder %s34, 1
      %p267 = por %p265, %p266
      %p268 = scmp.ne.s32.totalorder %s259, %s260
      %p269 = scmp.eq.s32.totalorder %s34, 0
      %p270 = por %p268, %p269
      %p271 = scmp.ne.s32.totalorder %s259, %s260
      %p272 = scmp.eq.s32.totalorder %s35, 1
      %p273 = por %p271, %p272
      %p275 = scmp.ne.s32.totalorder %s260, %s274
      %p276 = scmp.eq.s32.totalorder %s35, 0
      %p277 = por %p275, %p276
      %s279 = sadd.s32 %s278, 1
      %p282 = scmp.eq.s32.totalorder %s29, 1
      %p283 = scmp.ne.s32.totalorder %s278, %s280
      %p284 = scmp.eq.s32.totalorder %s29, 0
      %p285 = por %p283, %p284
      %p286 = scmp.ne.s32.totalorder %s278, %s280
      %p287 = scmp.eq.s32.totalorder %s34, 1
      %p288 = por %p286, %p287
      %p289 = scmp.ne.s32.totalorder %s280, %s281
      %p290 = scmp.eq.s32.totalorder %s34, 0
      %p291 = por %p289, %p290
      %p292 = scmp.ne.s32.totalorder %s280, %s281
      %p293 = scmp.eq.s32.totalorder %s35, 1
      %p294 = por %p292, %p293
      %p296 = scmp.ne.s32.totalorder %s281, %s295
      %p297 = scmp.eq.s32.totalorder %s35, 0
      %p298 = por %p296, %p297
      %s300 = sadd.s32 %s299, 1
      %p303 = scmp.eq.s32.totalorder %s29, 1
      %p304 = scmp.ne.s32.totalorder %s299, %s301
      %p305 = scmp.eq.s32.totalorder %s29, 0
      %p306 = por %p304, %p305
      %p307 = scmp.ne.s32.totalorder %s299, %s301
      %p308 = scmp.eq.s32.totalorder %s34, 1
      %p309 = por %p307, %p308
      %p310 = scmp.ne.s32.totalorder %s301, %s302
      %p311 = scmp.eq.s32.totalorder %s34, 0
      %p312 = por %p310, %p311
      %p313 = scmp.ne.s32.totalorder %s301, %s302
      %p314 = scmp.eq.s32.totalorder %s35, 1
      %p315 = por %p313, %p314
      %p317 = scmp.ne.s32.totalorder %s302, %s316
      %p318 = scmp.eq.s32.totalorder %s35, 0
      %p319 = por %p317, %p318
      %s321 = sadd.s32 %s320, 1
      %p324 = scmp.eq.s32.totalorder %s29, 1
      %p325 = scmp.ne.s32.totalorder %s320, %s322
      %p326 = scmp.eq.s32.totalorder %s29, 0
      %p327 = por %p325, %p326
      %p328 = scmp.ne.s32.totalorder %s320, %s322
      %p329 = scmp.eq.s32.totalorder %s34, 1
      %p330 = por %p328, %p329
      %p331 = scmp.ne.s32.totalorder %s322, %s323
      %p332 = scmp.eq.s32.totalorder %s34, 0
      %p333 = por %p331, %p332
      %p334 = scmp.ne.s32.totalorder %s322, %s323
      %p335 = scmp.eq.s32.totalorder %s35, 1
      %p336 = por %p334, %p335
      %p338 = scmp.ne.s32.totalorder %s323, %s337
      %p339 = scmp.eq.s32.totalorder %s35, 0
      %p340 = por %p338, %p339
      %s342 = sadd.s32 %s341, 1
      %p345 = scmp.eq.s32.totalorder %s29, 1
      %p346 = scmp.ne.s32.totalorder %s341, %s343
      %p347 = scmp.eq.s32.totalorder %s29, 0
      %p348 = por %p346, %p347
      %p349 = scmp.ne.s32.totalorder %s341, %s343
      %p350 = scmp.eq.s32.totalorder %s34, 1
      %p351 = por %p349, %p350
      %p352 = scmp.ne.s32.totalorder %s343, %s344
      %p353 = scmp.eq.s32.totalorder %s34, 0
      %p354 = por %p352, %p353
      %p355 = scmp.ne.s32.totalorder %s343, %s344
      %p356 = scmp.eq.s32.totalorder %s35, 1
      %p357 = por %p355, %p356
      %p359 = scmp.ne.s32.totalorder %s344, %s358
      %p360 = scmp.eq.s32.totalorder %s35, 0
      %p361 = por %p359, %p360
      %s363 = sadd.s32 %s362, 1
      %p366 = scmp.eq.s32.totalorder %s29, 1
      %p367 = scmp.ne.s32.totalorder %s362, %s364
      %p368 = scmp.eq.s32.totalorder %s29, 0
      %p369 = por %p367, %p368
      %p370 = scmp.ne.s32.totalorder %s362, %s364
      %p371 = scmp.eq.s32.totalorder %s34, 1
      %p372 = por %p370, %p371
      %p373 = scmp.ne.s32.totalorder %s364, %s365
      %p374 = scmp.eq.s32.totalorder %s34, 0
      %p375 = por %p373, %p374
      %p376 = scmp.ne.s32.totalorder %s364, %s365
      %p377 = scmp.eq.s32.totalorder %s35, 1
      %p378 = por %p376, %p377
      %p380 = scmp.ne.s32.totalorder %s365, %s379
      %p381 = scmp.eq.s32.totalorder %s35, 0
      %p382 = por %p380, %p381
      %s383 = ssub.s32 %s36, %s48
      %p384 = scmp.eq.s32.totalorder %s383, 0
      %s386 = sadd.s32 %s385, 1
      %s387 = scalar_select %p384, %s385, %s386
      %p390 = pneg %p384
      %p391 = scmp.eq.s32.totalorder %s29, 1
      %p392 = por %p390, %p391
      %p393 = scmp.ne.s32.totalorder %s385, %s388
      %p394 = scmp.eq.s32.totalorder %s29, 0
      %p395 = por %p393, %p394
      %p396 = scmp.ne.s32.totalorder %s385, %s388
      %p397 = scmp.eq.s32.totalorder %s34, 1
      %p398 = por %p396, %p397
      %p399 = scmp.ne.s32.totalorder %s388, %s389
      %p400 = scmp.eq.s32.totalorder %s34, 0
      %p401 = por %p399, %p400
      %p402 = scmp.ne.s32.totalorder %s388, %s389
      %p403 = scmp.eq.s32.totalorder %s35, 1
      %p404 = por %p402, %p403
      %p406 = scmp.ne.s32.totalorder %s389, %s405
      %p407 = scmp.eq.s32.totalorder %s35, 0
      %p408 = por %p406, %p407
      %p409 = scmp.le.s32.totalorder 1, %s29
      %p410 = scmp.lt.s32.totalorder %s29, 3
      %p411 = pnand %p409, %p410
      %p412 = pneg %p411
      // Predicated region
      $region9: #{tpu_custom_call.1} parent=5 // pred_check
        _
      $region10: #{tpu_custom_call.1} parent=5 // pred_check_branch
        %414 = sbr.rel (%p411) target = $region12
      $region11: #{tpu_custom_call.1} parent=5 // pred_region
        %s415 = ssub.s32 %s29, 1
        // Predicated region
        $region13: #{tpu_custom_call.1} parent=11 // pred_check
          %p416 = pneg %p67
        $region14: #{tpu_custom_call.1} parent=11 // pred_check_branch
          %418 = sbr.rel (%p416) target = $region16
        $region15: #{tpu_custom_call.1} parent=11 // pred_region
          %p419 = scmp.lt.s32.totalorder %s38, 0
          %s420 = scalar_select %p419, %s38, 0
          %s421 = smul.addr %s420, 2
          %s422 = smul.addr %s421, 8
          %s423 = scalar_lea.vmem %s0, %s422
        $region16: #{tpu_custom_call.1} parent=11 // pred_fallthru
          _
        // Predicated region
        $region17: #{tpu_custom_call.1} parent=11 // pred_check
          %p424 = pneg %p93
        $region18: #{tpu_custom_call.1} parent=11 // pred_check_branch
          %426 = sbr.rel (%p424) target = $region20
        $region19: #{tpu_custom_call.1} parent=11 // pred_region
          %p427 = scmp.lt.s32.totalorder %s38, 0
          %s428 = scalar_select %p427, %s38, 0
          %s429 = smul.addr %s428, 2
          %s430 = scalar_lea.vmem %s1, %s429
        $region20: #{tpu_custom_call.1} parent=11 // pred_fallthru
          _
        // Predicated region
        $region21: #{tpu_custom_call.1} parent=11 // pred_check
          %p431 = pneg %p270
        $region22: #{tpu_custom_call.1} parent=11 // pred_check_branch
          %433 = sbr.rel (%p431) target = $region24
        $region23: #{tpu_custom_call.1} parent=11 // pred_region
          %s435 = ssub.s32 16, 16
          %436 = vsyncadd [#allocation9], %s435
          %s438 = sshll.u32 [#allocation10], 4
          %s439 = int_to_ptr.vmem [resolvable:$true] %s438
          %441 = dma.hbm_to_vmem [thread:$0]  %s8, 16, %s439, [#allocation9]
        $region24: #{tpu_custom_call.1} parent=11 // pred_fallthru
          _
        // Predicated region
        $region25: #{tpu_custom_call.1} parent=11 // pred_check
          %p442 = pneg %p291
        $region26: #{tpu_custom_call.1} parent=11 // pred_check_branch
          %444 = sbr.rel (%p442) target = $region28
        $region27: #{tpu_custom_call.1} parent=11 // pred_region
          _
        $region28: #{tpu_custom_call.1} parent=11 // pred_fallthru
          _
        // Predicated region
        $region29: #{tpu_custom_call.1} parent=11 // pred_check
          %p445 = pneg %p312
        $region30: #{tpu_custom_call.1} parent=11 // pred_check_branch
          %447 = sbr.rel (%p445) target = $region32
        $region31: #{tpu_custom_call.1} parent=11 // pred_region
          _
        $region32: #{tpu_custom_call.1} parent=11 // pred_fallthru
          _
        // Predicated region
        $region33: #{tpu_custom_call.1} parent=11 // pred_check
          %p448 = pneg %p333
        $region34: #{tpu_custom_call.1} parent=11 // pred_check_branch
          %450 = sbr.rel (%p448) target = $region36
        $region35: #{tpu_custom_call.1} parent=11 // pred_region
          _
        $region36: #{tpu_custom_call.1} parent=11 // pred_fallthru
          _
        // Predicated region
        $region37: #{tpu_custom_call.1} parent=11 // pred_check
          %p451 = pneg %p354
        $region38: #{tpu_custom_call.1} parent=11 // pred_check_branch
          %453 = sbr.rel (%p451) target = $region40
        $region39: #{tpu_custom_call.1} parent=11 // pred_region
          _
        $region40: #{tpu_custom_call.1} parent=11 // pred_fallthru
          _
        // Predicated region
        $region41: #{tpu_custom_call.1} parent=11 // pred_check
          %p454 = pneg %p375
        $region42: #{tpu_custom_call.1} parent=11 // pred_check_branch
          %456 = sbr.rel (%p454) target = $region44
        $region43: #{tpu_custom_call.1} parent=11 // pred_region
          _
        $region44: #{tpu_custom_call.1} parent=11 // pred_fallthru
          _
      $region12: #{tpu_custom_call.1} parent=5 // pred_fallthru
        _
      %p457 = scmp.lt.s32.totalorder %s29, 2
      // Predicated region
      $region45: #{tpu_custom_call.1} parent=5 // pred_check
        %p458 = pneg %p457
      $region46: #{tpu_custom_call.1} parent=5 // pred_check_branch
        %460 = sbr.rel (%p458) target = $region48
      $region47: #{tpu_custom_call.1} parent=5 // pred_region
        // Predicated region
        $region49: #{tpu_custom_call.1} parent=47 // pred_check
          %p461 = pneg %p113
        $region50: #{tpu_custom_call.1} parent=47 // pred_check_branch
          %463 = sbr.rel (%p461) target = $region52
        $region51: #{tpu_custom_call.1} parent=47 // pred_region
          %p464 = scmp.lt.s32.totalorder %s37, 1
          %s465 = scalar_select %p464, %s37, 1
          %s466 = smul.addr %s465, 16
          %s467 = smul.addr %s466, 4
          %s468 = scalar_lea.vmem %s2, %s467
        $region52: #{tpu_custom_call.1} parent=47 // pred_fallthru
          _
        // Predicated region
        $region53: #{tpu_custom_call.1} parent=47 // pred_check
          %p469 = pneg %p139
        $region54: #{tpu_custom_call.1} parent=47 // pred_check_branch
          %471 = sbr.rel (%p469) target = $region56
        $region55: #{tpu_custom_call.1} parent=47 // pred_region
          %p472 = scmp.lt.s32.totalorder %s37, 1
          %s473 = scalar_select %p472, %s37, 1
          %s474 = smul.addr %s473, 8
          %s475 = smul.addr %s474, 4
          %s476 = scalar_lea.vmem %s3, %s475
        $region56: #{tpu_custom_call.1} parent=47 // pred_fallthru
          _
        // Predicated region
        $region57: #{tpu_custom_call.1} parent=47 // pred_check
          %p477 = pneg %p165
        $region58: #{tpu_custom_call.1} parent=47 // pred_check_branch
          %479 = sbr.rel (%p477) target = $region60
        $region59: #{tpu_custom_call.1} parent=47 // pred_region
          %s480 = sand.u32 %s155, 1
          %s481 = scalar_lea.sflag [#allocation6], %s480
          %s482 = sand.u32 %s155, 1
          %s483 = smul.addr %s482, 32
          %s484 = scalar_lea.vmem [#allocation5], %s483
          %s486 = ssub.s32 512, 512
          %487 = vsyncadd %s481, %s486
          %s488 = smul.addr %s37, 8
          %s489 = smul.addr %s488, 64
          %s490 = scalar_lea.hbm %s4, %s489
          %s491 = sshll.u32 %s484, 4
          %s492 = int_to_ptr.vmem [resolvable:$true] %s491
          %497 = dma.hbm_to_vmem [thread:$0]  %s490, 512, %s492, %s481, 64, 64, 4
        $region60: #{tpu_custom_call.1} parent=47 // pred_fallthru
          _
        // Predicated region
        $region61: #{tpu_custom_call.1} parent=47 // pred_check
          %p498 = pneg %p191
        $region62: #{tpu_custom_call.1} parent=47 // pred_check_branch
          %500 = sbr.rel (%p498) target = $region64
        $region63: #{tpu_custom_call.1} parent=47 // pred_region
          %p501 = scmp.lt.s32.totalorder %s37, 1
          %s502 = scalar_select %p501, %s37, 1
          %s503 = smul.addr %s502, 16
          %s504 = smul.addr %s503, 4
          %s505 = scalar_lea.vmem %s5, %s504
        $region64: #{tpu_custom_call.1} parent=47 // pred_fallthru
          _
        // Predicated region
        $region65: #{tpu_custom_call.1} parent=47 // pred_check
          %p506 = pneg %p217
        $region66: #{tpu_custom_call.1} parent=47 // pred_check_branch
          %508 = sbr.rel (%p506) target = $region68
        $region67: #{tpu_custom_call.1} parent=47 // pred_region
          %p509 = scmp.lt.s32.totalorder %s37, 1
          %s510 = scalar_select %p509, %s37, 1
          %s511 = smul.addr %s510, 8
          %s512 = scalar_lea.vmem %s6, %s511
        $region68: #{tpu_custom_call.1} parent=47 // pred_fallthru
          _
        // Predicated region
        $region69: #{tpu_custom_call.1} parent=47 // pred_check
          %p513 = pneg %p243
        $region70: #{tpu_custom_call.1} parent=47 // pred_check_branch
          %515 = sbr.rel (%p513) target = $region72
        $region71: #{tpu_custom_call.1} parent=47 // pred_region
          %s516 = sand.u32 %s29, 1
          %s517 = scalar_lea.sflag [#allocation9], %s516
          %s518 = sand.u32 %s233, 1
          %s519 = scalar_lea.vmem [#allocation8], %s518
          %s521 = ssub.s32 16, 16
          %522 = vsyncadd %s517, %s521
          %s523 = smul.addr %s37, 16
          %s524 = scalar_lea.hbm %s7, %s523
          %s526 = sshll.u32 %s519, 4
          %s527 = int_to_ptr.vmem [resolvable:$true] %s526
          %529 = dma.hbm_to_vmem [thread:$0]  %s524, 16, %s527, %s517
        $region72: #{tpu_custom_call.1} parent=47 // pred_fallthru
          _
      $region48: #{tpu_custom_call.1} parent=5 // pred_fallthru
        _
      %p530 = scmp.le.s32.totalorder 1, %s29
      %p531 = scmp.lt.s32.totalorder %s29, 3
      %p532 = pnand %p530, %p531
      %p533 = pneg %p532
      // Predicated region
      $region73: #{tpu_custom_call.1} parent=5 // pred_check
        _
      $region74: #{tpu_custom_call.1} parent=5 // pred_check_branch
        %535 = sbr.rel (%p532) target = $region76
      $region75: #{tpu_custom_call.1} parent=5 // pred_region
        %s536 = ssub.s32 %s29, 1
        %s537 = sand.u32 %s158, 1
        %s538 = scalar_lea.sflag [#allocation6], %s537
        %s539 = sand.u32 %s158, 1
        %s540 = smul.addr %s539, 32
        %s541 = scalar_lea.vmem [#allocation5], %s540
        // Predicated region
        $region77: #{tpu_custom_call.1} parent=75 // pred_check
          %p542 = pneg %p171
        $region78: #{tpu_custom_call.1} parent=75 // pred_check_branch
          %544 = sbr.rel (%p542) target = $region80
        $region79: #{tpu_custom_call.1} parent=75 // pred_region
          %545 = dma.done %s538, 512
        $region80: #{tpu_custom_call.1} parent=75 // pred_fallthru
          _
        %s546 = sand.u32 %s34, 1
        %s547 = scalar_lea.sflag [#allocation9], %s546
        %s548 = sand.u32 %s236, 1
        %s549 = scalar_lea.vmem [#allocation8], %s548
        // Predicated region
        $region81: #{tpu_custom_call.1} parent=75 // pred_check
          %p550 = pneg %p249
        $region82: #{tpu_custom_call.1} parent=75 // pred_check_branch
          %552 = sbr.rel (%p550) target = $region84
        $region83: #{tpu_custom_call.1} parent=75 // pred_region
          %553 = dma.done %s547, 16
        $region84: #{tpu_custom_call.1} parent=75 // pred_fallthru
          _
        // Predicated region
        $region85: #{tpu_custom_call.1} parent=75 // pred_check
          %p554 = pneg %p270
        $region86: #{tpu_custom_call.1} parent=75 // pred_check_branch
          %556 = sbr.rel (%p554) target = $region88
        $region87: #{tpu_custom_call.1} parent=75 // pred_region
          %557 = dma.done [#allocation9], 16
        $region88: #{tpu_custom_call.1} parent=75 // pred_fallthru
          _
        %p558 = scmp.lt.s32.totalorder %s38, 0
        %s559 = scalar_select %p558, %s38, 0
        %s560 = smul.addr %s559, 2
        %s561 = smul.addr %s560, 8
        %s562 = scalar_lea.vmem %s0, %s561
        %p563 = pneg %p67
        %p564 = pneg %p64
        %p565 = scmp.lt.s32.totalorder %s38, 0
        %s566 = scalar_select %p565, %s38, 0
        %s567 = smul.addr %s566, 2
        %s568 = scalar_lea.vmem %s1, %s567
        %p569 = pneg %p93
        %p570 = pneg %p90
        %p571 = scmp.lt.s32.totalorder %s39, 1
        %s572 = scalar_select %p571, %s39, 1
        %s573 = smul.addr %s572, 16
        %s574 = smul.addr %s573, 4
        %s575 = scalar_lea.vmem %s2, %s574
        %p576 = pneg %p119
        %p577 = pneg %p116
        %p578 = scmp.lt.s32.totalorder %s39, 1
        %s579 = scalar_select %p578, %s39, 1
        %s580 = smul.addr %s579, 8
        %s581 = smul.addr %s580, 4
        %s582 = scalar_lea.vmem %s3, %s581
        %p583 = pneg %p145
        %p584 = pneg %p142
        %s585 = sand.u32 %s158, 1
        %s586 = scalar_lea.sflag [#allocation6], %s585
        %s587 = sand.u32 %s158, 1
        %s588 = smul.addr %s587, 32
        %s589 = scalar_lea.vmem [#allocation5], %s588
        %p590 = pneg %p171
        %p591 = pneg %p168
        %p592 = scmp.lt.s32.totalorder %s39, 1
        %s593 = scalar_select %p592, %s39, 1
        %s594 = smul.addr %s593, 16
        %s595 = smul.addr %s594, 4
        %s596 = scalar_lea.vmem %s5, %s595
        %p597 = pneg %p197
        %p598 = pneg %p194
        %p599 = scmp.lt.s32.totalorder %s39, 1
        %s600 = scalar_select %p599, %s39, 1
        %s601 = smul.addr %s600, 8
        %s602 = scalar_lea.vmem %s6, %s601
        %p603 = pneg %p223
        %p604 = pneg %p220
        %s605 = sand.u32 %s34, 1
        %s606 = scalar_lea.sflag [#allocation9], %s605
        %s607 = sand.u32 %s236, 1
        %s608 = scalar_lea.vmem [#allocation8], %s607
        %p609 = pneg %p249
        %p610 = pneg %p246
        %p611 = pneg %p270
        %p612 = pneg %p267
        %p613 = pneg %p291
        %p614 = pneg %p288
        %p615 = pneg %p312
        %p616 = pneg %p309
        %p617 = pneg %p333
        %p618 = pneg %p330
        %p619 = pneg %p354
        %p620 = pneg %p351
        %p621 = pneg %p375
        %p622 = pneg %p372
        %p623 = pneg %p401
        %p624 = pneg %p398
        %p625 = scmp.lt.s32.totalorder %s38, 0
        %s626 = scalar_select %p625, %s38, 0
        %s627 = smul.addr %s626, 2
        %s628 = smul.addr %s627, 8
        %s629 = scalar_lea.vmem %s0, %s628
        %p630 = scmp.lt.s32.totalorder %s38, 0
        %s631 = scalar_select %p630, %s38, 0
        %s632 = smul.addr %s631, 2
        %s633 = scalar_lea.vmem %s1, %s632
        %p634 = scmp.lt.s32.totalorder %s39, 1
        %s635 = scalar_select %p634, %s39, 1
        %s636 = smul.addr %s635, 16
        %s637 = smul.addr %s636, 4
        %s638 = scalar_lea.vmem %s2, %s637
        %p639 = scmp.lt.s32.totalorder %s39, 1
        %s640 = scalar_select %p639, %s39, 1
        %s641 = smul.addr %s640, 8
        %s642 = smul.addr %s641, 4
        %s643 = scalar_lea.vmem %s3, %s642
        %p644 = scmp.lt.s32.totalorder %s39, 1
        %s645 = scalar_select %p644, %s39, 1
        %s646 = smul.addr %s645, 16
        %s647 = smul.addr %s646, 4
        %s648 = scalar_lea.vmem %s5, %s647
        %p649 = scmp.lt.s32.totalorder %s39, 1
        %s650 = scalar_select %p649, %s39, 1
        %s651 = smul.addr %s650, 8
        %s652 = scalar_lea.vmem %s6, %s651
        %p654 = scmp.eq.s32.totalorder %s39, 0
        // Predicated region
        $region89: #{tpu_custom_call.1} parent=75 // pred_check
          %p655 = pneg %p654
        $region90: #{tpu_custom_call.1} parent=75 // pred_check_branch
          %657 = sbr.rel (%p655) target = $region92
        $region91: #{tpu_custom_call.1} parent=75 // pred_region
          %v658 = vld [vmem:[%s629] sm:$0xff]
          %v659 = vld [vmem:[%s629 + $0x8] sm:$0xff]
          %vm660 = vcmask 523264
          %661 = vst.msk [vmem:[#allocation2] sm:$0xff] %vm660, %v658
          %662 = vst.msk [vmem:[#allocation2 + $0x8] sm:$0xff] %vm660, %v659
          %v663 = vld [vmem:[%s633] sm:$0x3]
          %v664 = vlaneseq
          %v665 = vshrl.u32 %v664, 7
          %v666 = vsub.s32 0, %v665
          %v667 = vrot.slane %v663, %v666
          %669 = vbcast.lane.b32.xlu0 %v667, 256
          %v670 = vpop.permute.xlu0 %669
          %v671 = vlaneseq
          %v672 = vshrl.u32 %v671, 7
          %v673 = vsub.s32 1, %v672
          %v674 = vrot.slane %v663, %v673
          %676 = vbcast.lane.b32.xlu0 %v674, 256
          %v677 = vpop.permute.xlu0 %676
          %v680 = vunpack.c.l.s4 1966171168
          %v681 = vunpack.c.0.s8 %v680
          %v682 = vlaneseq
          %v683 = vshrl.u32 %v682, 7
          %v684 = vsub.s32 %v681, %v683
          %v685 = vrot.slane %v663, %v684
          %v686 = vcombine.high %v685, %v685
          %v688 = vunpack.c.l.s4 1966171168
          %v689 = vunpack.c.0.s8 %v688
          %v690 = vlaneseq
          %v691 = vshrl.u32 %v690, 7
          %v692 = vsub.s32 %v689, %v691
          %v693 = vrot.slane %v685, %v692
          %v695 = vunpack.c.l.s4 1966171168
          %v696 = vunpack.c.0.s8 %v695
          %v697 = vlaneseq
          %v698 = vshrl.u32 %v697, 7
          %v699 = vsub.s32 %v696, %v698
          %v700 = vrot.slane %v686, %v699
          %v701 = vlaneseq
          %v702 = vshrl.u32 %v701, 7
          %v703 = vsub.s32 0, %v702
          %v704 = vrot.slane %v693, %v703
          %v705 = vlaneseq
          %v706 = vshrl.u32 %v705, 7
          %v707 = vsub.s32 0, %v706
          %v708 = vrot.slane %v700, %v707
          %v711 = vmul.f32 %v670, %v704
          %v712 = vmul.f32 %v677, %v708
          %vm713 = vcmp.gt.f32.partialorder %v711, 0.0
          %vm714 = vcmp.gt.f32.partialorder %v712, 0.0
          %v715 = vsel %vm713, 0.0, -3.4028235e+38
          %v716 = vsel %vm714, 0.0, -3.4028235e+38
          %vm717 = vcmask 64512
          %718 = vst.msk [vmem:[#allocation3] sm:$0xff] %vm717, %v715
          %719 = vst.msk [vmem:[#allocation3 + $0x8] sm:$0xff] %vm717, %v716
        $region92: #{tpu_custom_call.1} parent=75 // pred_fallthru
          _
        %v720 = vld [vmem:[#allocation2] sm:$0xff]
        %v721 = vld [vmem:[#allocation2 + $0x8] sm:$0xff]
        %v722 = vld [vmem:[#allocation3] sm:$0xff]
        %v723 = vld [vmem:[#allocation3 + $0x8] sm:$0xff]
        %v724 = vld [vmem:[%s652] sm:$0x3f]
        %vm725 = vcmask 523264
        %v726 = vsel %vm725, %v720, 0.0
        %727 = vadd.xlane.f32.xlu0 %v726
        %v728 = vpop.xlane.xlu0 %727
        %v729 = vsel %vm725, %v721, 0.0
        %730 = vadd.xlane.f32.xlu0 %v729
        %v731 = vpop.xlane.xlu0 %730
        %v732 = vrcp.pop 64.0
        %v733 = vmul.f32 %v728, %v732
        %v734 = vmul.f32 %v731, %v732
        %v735 = vsub.f32 %v720, %v733
        %v736 = vsub.f32 %v721, %v734
        %v737 = vmul.f32 %v735, %v735
        %v738 = vmul.f32 %v736, %v736
        %v739 = vsel %vm725, %v737, 0.0
        %740 = vadd.xlane.f32.xlu0 %v739
        %v741 = vpop.xlane.xlu0 %740
        %v742 = vsel %vm725, %v738, 0.0
        %743 = vadd.xlane.f32.xlu0 %v742
        %v744 = vpop.xlane.xlu0 %743
        %v745 = vmul.f32 %v741, %v732
        %v746 = vmul.f32 %v744, %v732
        %v747 = vadd.f32 %v745, 1e-05
        %v748 = vadd.f32 %v746, 1e-05
        %v749 = vrsqrt.pop %v747
        %v750 = vrsqrt.pop %v748
        %v751 = vmul.f32 %v735, %v749
        %v752 = vmul.f32 %v736, %v750
        %v753 = vlaneseq
        %v754 = vshrl.u32 %v753, 7
        %v755 = vsub.s32 0, %v754
        %v756 = vrot.slane %v724, %v755
        %v757 = vmul.f32 %v751, %v756
        %v758 = vmul.f32 %v752, %v756
        %v759 = vlaneseq
        %v760 = vshrl.u32 %v759, 7
        %v761 = vsub.s32 1, %v760
        %v762 = vrot.slane %v724, %v761
        %v763 = vadd.f32 %v757, %v762
        %v764 = vadd.f32 %v758, %v762
        %v765 = vpack.c.bf16 %v764, %v763
        %v766 = vld [vmem:[%s638] sm:$0xff]
        %v767 = vld [vmem:[%s638 + $0x8] sm:$0xff]
        %v768 = vld [vmem:[%s638 + $0x10] sm:$0xff]
        %v769 = vld [vmem:[%s638 + $0x18] sm:$0xff]
        %v770 = vld [vmem:[%s638 + $0x20] sm:$0xff]
        %v771 = vld [vmem:[%s638 + $0x28] sm:$0xff]
        %v772 = vld [vmem:[%s638 + $0x30] sm:$0xff]
        %v773 = vld [vmem:[%s638 + $0x38] sm:$0xff]
        %v782 = vunpack.c.l.b16 %v766
        %v783 = vunpack.c.h.b16 %v766
        %v784 = vunpack.c.l.b16 %v767
        %v785 = vunpack.c.h.b16 %v767
        %v786 = vunpack.c.l.b16 %v768
        %v787 = vunpack.c.h.b16 %v768
        %v788 = vunpack.c.l.b16 %v769
        %v789 = vunpack.c.h.b16 %v769
        %v790 = vunpack.c.l.b16 %v770
        %v791 = vunpack.c.h.b16 %v770
        %v792 = vunpack.c.l.b16 %v771
        %v793 = vunpack.c.h.b16 %v771
        %v794 = vunpack.c.l.b16 %v772
        %v795 = vunpack.c.h.b16 %v772
        %v796 = vunpack.c.l.b16 %v773
        %v797 = vunpack.c.h.b16 %v773
        %v798 = vpack.c.b16 %v784, %v782
        %v799 = vpack.c.b16 %v785, %v783
        %v800 = vpack.c.b16 %v788, %v786
        %v801 = vpack.c.b16 %v789, %v787
        %v802 = vpack.c.b16 %v792, %v790
        %v803 = vpack.c.b16 %v793, %v791
        %v804 = vpack.c.b16 %v796, %v794
        %v805 = vpack.c.b16 %v797, %v795
        %v815 = vsel %vm725, %v765, 0
        %817 = vmatprep.subr.bf16.mxu0 %v799
        %818 = vmatpush1.bf16.msra.mxu0 %v798
        %819 = vmatprep.subr.bf16.mxu0 %v801
        %820 = vmatpush1.bf16.msra.mxu0 %v800
        %821 = vmatprep.subr.bf16.mxu0 %v803
        %822 = vmatpush1.bf16.msra.mxu0 %v802
        %823 = vmatprep.subr.bf16.mxu0 %v805
        %824 = vmatpush1.bf16.msra.mxu0 %v804
        %825 = vmatprep.subr.bf16.mxu0 0
        %826 = vmatpush1.bf16.msra.mxu0 0
        %827 = vmatprep.subr.bf16.mxu0 0
        %828 = vmatpush1.bf16.msra.mxu0 0
        %829 = vmatprep.subr.bf16.mxu0 0
        %830 = vmatpush1.bf16.msra.mxu0 0
        %831 = vmatprep.subr.bf16.mxu0 0
        %832 = vmatpush1.bf16.msra.mxu0 0
        %833 = vmatprep.subr.bf16.mxu0 0
        %834 = vmatpush1.bf16.msra.mxu0 0
        %835 = vmatprep.subr.bf16.mxu0 0
        %836 = vmatpush1.bf16.msra.mxu0 0
        %837 = vmatprep.subr.bf16.mxu0 0
        %838 = vmatpush1.bf16.msra.mxu0 0
        %839 = vmatprep.subr.bf16.mxu0 0
        %840 = vmatpush1.bf16.msra.mxu0 0
        %841 = vmatprep.subr.bf16.mxu0 0
        %842 = vmatpush1.bf16.msra.mxu0 0
        %843 = vmatprep.subr.bf16.mxu0 0
        %844 = vmatpush1.bf16.msra.mxu0 0
        %845 = vmatprep.subr.bf16.mxu0 0
        %846 = vmatpush1.bf16.msra.mxu0 0
        %847 = vmatprep.subr.bf16.mxu0 0
        %848 = vmatpush1.bf16.msra.mxu0 0
        %849 = vmatprep.mubr.bf16.mxu0 0
        %850 = vmatmul.mubr.bf16.gmra.mrb[0].mxu0 %v815
        %v851 = vpop.f32.mrb[0].mxu0
        %v852 = vadd.f32 0.0, %v851
        %v853 = vpop.f32.mrb[0].mxu0
        %v854 = vadd.f32 0.0, %v853
        %v855 = vpop.f32.mrb[0].mxu0
        %v856 = vadd.f32 0.0, %v855
        %v857 = vpop.f32.mrb[0].mxu0
        %v858 = vadd.f32 0.0, %v857
        %859 = vdwg.mxu0
        %v860 = vmul.f32 %v852, 0.25
        %v861 = vmul.f32 %v856, 0.25
        %v862 = vpack.c.bf16 %v861, %v860
        %v864 = vunpack.c.l.b16 %v862
        %v865 = vunpack.c.h.b16 %v862
        %v866 = vpack.c.b16 %v864, %v864
        %v867 = vpack.c.b16 %v865, %v865
        %v868 = vpack.c.bf16 %v856, %v852
        %v870 = vunpack.c.l.b16 %v868
        %v871 = vunpack.c.h.b16 %v868
        %v872 = vpack.c.bf16 %v858, %v854
        %v874 = vunpack.c.l.b16 %v872
        %v875 = vunpack.c.h.b16 %v872
        %v876 = vpack.c.b16 %v874, %v874
        %v877 = vpack.c.b16 %v875, %v875
        %v878 = vpack.c.b16 %v870, %v870
        %879 = vrot.lane.b32.xlu0 %v878, 64
        %v880 = vpop.permute.xlu0 %879
        %vm881 = vcmask 130048
        %v883 = vsel %vm881, %v866, 0
        %v886 = vsel %vm881, %v880, 0
        %888 = vmatprep.subr.bf16.mxu0 0
        %889 = vmatpush1.bf16.xpose.msra.mxu0 %v886
        %890 = vmatprep.subr.bf16.mxu0 0
        %891 = vmatpush1.bf16.xpose.msra.mxu0 0
        %892 = vmatprep.subr.bf16.mxu0 0
        %893 = vmatpush1.bf16.xpose.msra.mxu0 0
        %894 = vmatprep.subr.bf16.mxu0 0
        %895 = vmatpush1.bf16.xpose.msra.mxu0 0
        %896 = vmatprep.subr.bf16.mxu0 0
        %897 = vmatpush1.bf16.xpose.msra.mxu0 0
        %898 = vmatprep.subr.bf16.mxu0 0
        %899 = vmatpush1.bf16.xpose.msra.mxu0 0
        %900 = vmatprep.subr.bf16.mxu0 0
        %901 = vmatpush1.bf16.xpose.msra.mxu0 0
        %902 = vmatprep.subr.bf16.mxu0 0
        %903 = vmatpush1.bf16.xpose.msra.mxu0 0
        %904 = vmatprep.subr.bf16.mxu0 0
        %905 = vmatpush1.bf16.xpose.msra.mxu0 0
        %906 = vmatprep.subr.bf16.mxu0 0
        %907 = vmatpush1.bf16.xpose.msra.mxu0 0
        %908 = vmatprep.subr.bf16.mxu0 0
        %909 = vmatpush1.bf16.xpose.msra.mxu0 0
        %910 = vmatprep.subr.bf16.mxu0 0
        %911 = vmatpush1.bf16.xpose.msra.mxu0 0
        %912 = vmatprep.subr.bf16.mxu0 0
        %913 = vmatpush1.bf16.xpose.msra.mxu0 0
        %914 = vmatprep.subr.bf16.mxu0 0
        %915 = vmatpush1.bf16.xpose.msra.mxu0 0
        %916 = vmatprep.subr.bf16.mxu0 0
        %917 = vmatpush1.bf16.xpose.msra.mxu0 0
        %918 = vmatprep.subr.bf16.mxu0 0
        %919 = vmatpush1.bf16.xpose.msra.mxu0 0
        %920 = vmatprep.mubr.bf16.mxu0 0
        %921 = vmatmul.mubr.bf16.gmra.mrb[0].mxu0 %v883
        %v922 = vpop.f32.mrb[0].mxu0
        %v923 = vadd.f32 %v722, %v922
        %v924 = vpop.f32.mrb[0].mxu0
        %v925 = vpop.f32.mrb[0].mxu0
        %v926 = vpop.f32.mrb[0].mxu0
        %927 = vdwg.mxu0
        %v928 = vpack.c.b16 %v871, %v871
        %929 = vrot.lane.b32.xlu0 %v928, 64
        %v930 = vpop.permute.xlu0 %929
        %v932 = vsel %vm881, %v867, 0
        %v935 = vsel %vm881, %v930, 0
        %937 = vmatprep.subr.bf16.mxu0 0
        %938 = vmatpush1.bf16.xpose.msra.mxu0 %v935
        %939 = vmatprep.subr.bf16.mxu0 0
        %940 = vmatpush1.bf16.xpose.msra.mxu0 0
        %941 = vmatprep.subr.bf16.mxu0 0
        %942 = vmatpush1.bf16.xpose.msra.mxu0 0
        %943 = vmatprep.subr.bf16.mxu0 0
        %944 = vmatpush1.bf16.xpose.msra.mxu0 0
        %945 = vmatprep.subr.bf16.mxu0 0
        %946 = vmatpush1.bf16.xpose.msra.mxu0 0
        %947 = vmatprep.subr.bf16.mxu0 0
        %948 = vmatpush1.bf16.xpose.msra.mxu0 0
        %949 = vmatprep.subr.bf16.mxu0 0
        %950 = vmatpush1.bf16.xpose.msra.mxu0 0
        %951 = vmatprep.subr.bf16.mxu0 0
        %952 = vmatpush1.bf16.xpose.msra.mxu0 0
        %953 = vmatprep.subr.bf16.mxu0 0
        %954 = vmatpush1.bf16.xpose.msra.mxu0 0
        %955 = vmatprep.subr.bf16.mxu0 0
        %956 = vmatpush1.bf16.xpose.msra.mxu0 0
        %957 = vmatprep.subr.bf16.mxu0 0
        %958 = vmatpush1.bf16.xpose.msra.mxu0 0
        %959 = vmatprep.subr.bf16.mxu0 0
        %960 = vmatpush1.bf16.xpose.msra.mxu0 0
        %961 = vmatprep.subr.bf16.mxu0 0
        %962 = vmatpush1.bf16.xpose.msra.mxu0 0
        %963 = vmatprep.subr.bf16.mxu0 0
        %964 = vmatpush1.bf16.xpose.msra.mxu0 0
        %965 = vmatprep.subr.bf16.mxu0 0
        %966 = vmatpush1.bf16.xpose.msra.mxu0 0
        %967 = vmatprep.subr.bf16.mxu0 0
        %968 = vmatpush1.bf16.xpose.msra.mxu0 0
        %969 = vmatprep.mubr.bf16.mxu0 0
        %970 = vmatmul.mubr.bf16.gmra.mrb[0].mxu0 %v932
        %v971 = vpop.f32.mrb[0].mxu0
        %v972 = vadd.f32 %v723, %v971
        %v973 = vpop.f32.mrb[0].mxu0
        %v974 = vpop.f32.mrb[0].mxu0
        %v975 = vpop.f32.mrb[0].mxu0
        %976 = vdwg.mxu0
        %vm977 = vcmask 64512
        %v978 = vsel %vm977, %v923, -inf
        %979 = vmax.xlane.f32.xlu0 %v978
        %v980 = vpop.xlane.xlu0 %979
        %v981 = vsel %vm977, %v972, -inf
        %982 = vmax.xlane.f32.xlu0 %v981
        %v983 = vpop.xlane.xlu0 %982
        %v984 = vsub.f32 %v923, %v980
        %v985 = vsub.f32 %v972, %v983
        %v986 = vmul.f32 %v984, 1.442695
        %v987 = vpow.pop %v986
        %v988 = vmul.f32 %v985, 1.442695
        %v989 = vpow.pop %v988
        %v990 = vsel %vm977, %v987, 0.0
        %991 = vadd.xlane.f32.xlu0 %v990
        %v992 = vpop.xlane.xlu0 %991
        %v993 = vsel %vm977, %v989, 0.0
        %994 = vadd.xlane.f32.xlu0 %v993
        %v995 = vpop.xlane.xlu0 %994
        %v996 = vrcp.pop %v992
        %v997 = vrcp.pop %v995
        %v998 = vmul.f32 %v987, %v996
        %v999 = vmul.f32 %v989, %v997
        %v1000 = vpack.c.bf16 %v998, %v998
        %v1001 = vpack.c.bf16 %v999, %v999
        %v1003 = vsel %vm977, %v1000, 0
        %vm1005 = vcmask 1043456
        %v1007 = vsel %vm1005, %v876, 0
        %1009 = vmatprep.subr.bf16.mxu0 0
        %1010 = vmatpush1.bf16.msra.mxu0 %v1007
        %1011 = vmatprep.subr.bf16.mxu0 0
        %1012 = vmatpush1.bf16.msra.mxu0 0
        %1013 = vmatprep.subr.bf16.mxu0 0
        %1014 = vmatpush1.bf16.msra.mxu0 0
        %1015 = vmatprep.subr.bf16.mxu0 0
        %1016 = vmatpush1.bf16.msra.mxu0 0
        %1017 = vmatprep.subr.bf16.mxu0 0
        %1018 = vmatpush1.bf16.msra.mxu0 0
        %1019 = vmatprep.subr.bf16.mxu0 0
        %1020 = vmatpush1.bf16.msra.mxu0 0
        %1021 = vmatprep.subr.bf16.mxu0 0
        %1022 = vmatpush1.bf16.msra.mxu0 0
        %1023 = vmatprep.subr.bf16.mxu0 0
        %1024 = vmatpush1.bf16.msra.mxu0 0
        %1025 = vmatprep.subr.bf16.mxu0 0
        %1026 = vmatpush1.bf16.msra.mxu0 0
        %1027 = vmatprep.subr.bf16.mxu0 0
        %1028 = vmatpush1.bf16.msra.mxu0 0
        %1029 = vmatprep.subr.bf16.mxu0 0
        %1030 = vmatpush1.bf16.msra.mxu0 0
        %1031 = vmatprep.subr.bf16.mxu0 0
        %1032 = vmatpush1.bf16.msra.mxu0 0
        %1033 = vmatprep.subr.bf16.mxu0 0
        %1034 = vmatpush1.bf16.msra.mxu0 0
        %1035 = vmatprep.subr.bf16.mxu0 0
        %1036 = vmatpush1.bf16.msra.mxu0 0
        %1037 = vmatprep.subr.bf16.mxu0 0
        %1038 = vmatpush1.bf16.msra.mxu0 0
        %1039 = vmatprep.subr.bf16.mxu0 0
        %1040 = vmatpush1.bf16.msra.mxu0 0
        %1041 = vmatprep.mubr.bf16.mxu0 0
        %1042 = vmatmul.mubr.bf16.gmra.mrb[0].mxu0 %v1003
        %v1043 = vpop.f32.mrb[0].mxu0
        %v1044 = vadd.f32 0.0, %v1043
        %v1045 = vpop.f32.mrb[0].mxu0
        %v1046 = vpop.f32.mrb[0].mxu0
        %v1047 = vpop.f32.mrb[0].mxu0
        %1048 = vdwg.mxu0
        %v1050 = vsel %vm977, %v1001, 0
        %v1053 = vsel %vm1005, %v877, 0
        %1055 = vmatprep.subr.bf16.mxu0 0
        %1056 = vmatpush1.bf16.msra.mxu0 %v1053
        %1057 = vmatprep.subr.bf16.mxu0 0
        %1058 = vmatpush1.bf16.msra.mxu0 0
        %1059 = vmatprep.subr.bf16.mxu0 0
        %1060 = vmatpush1.bf16.msra.mxu0 0
        %1061 = vmatprep.subr.bf16.mxu0 0
        %1062 = vmatpush1.bf16.msra.mxu0 0
        %1063 = vmatprep.subr.bf16.mxu0 0
        %1064 = vmatpush1.bf16.msra.mxu0 0
        %1065 = vmatprep.subr.bf16.mxu0 0
        %1066 = vmatpush1.bf16.msra.mxu0 0
        %1067 = vmatprep.subr.bf16.mxu0 0
        %1068 = vmatpush1.bf16.msra.mxu0 0
        %1069 = vmatprep.subr.bf16.mxu0 0
        %1070 = vmatpush1.bf16.msra.mxu0 0
        %1071 = vmatprep.subr.bf16.mxu0 0
        %1072 = vmatpush1.bf16.msra.mxu0 0
        %1073 = vmatprep.subr.bf16.mxu0 0
        %1074 = vmatpush1.bf16.msra.mxu0 0
        %1075 = vmatprep.subr.bf16.mxu0 0
        %1076 = vmatpush1.bf16.msra.mxu0 0
        %1077 = vmatprep.subr.bf16.mxu0 0
        %1078 = vmatpush1.bf16.msra.mxu0 0
        %1079 = vmatprep.subr.bf16.mxu0 0
        %1080 = vmatpush1.bf16.msra.mxu0 0
        %1081 = vmatprep.subr.bf16.mxu0 0
        %1082 = vmatpush1.bf16.msra.mxu0 0
        %1083 = vmatprep.subr.bf16.mxu0 0
        %1084 = vmatpush1.bf16.msra.mxu0 0
        %1085 = vmatprep.subr.bf16.mxu0 0
        %1086 = vmatpush1.bf16.msra.mxu0 0
        %1087 = vmatprep.mubr.bf16.mxu0 0
        %1088 = vmatmul.mubr.bf16.gmra.mrb[0].mxu0 %v1050
        %v1089 = vpop.f32.mrb[0].mxu0
        %v1090 = vadd.f32 0.0, %v1089
        %v1091 = vpop.f32.mrb[0].mxu0
        %v1092 = vpop.f32.mrb[0].mxu0
        %v1093 = vpop.f32.mrb[0].mxu0
        %1094 = vdwg.mxu0
        %1095 = vrot.lane.b32.xlu0 %v866, 112
        %v1096 = vpop.permute.xlu0 %1095
        %1097 = vrot.lane.b32.xlu0 %v878, 48
        %v1098 = vpop.permute.xlu0 %1097
        %v1100 = vsel %vm881, %v1096, 0
        %v1103 = vsel %vm881, %v1098, 0
        %1105 = vmatprep.subr.bf16.mxu0 0
        %1106 = vmatpush1.bf16.xpose.msra.mxu0 %v1103
        %1107 = vmatprep.subr.bf16.mxu0 0
        %1108 = vmatpush1.bf16.xpose.msra.mxu0 0
        %1109 = vmatprep.subr.bf16.mxu0 0
        %1110 = vmatpush1.bf16.xpose.msra.mxu0 0
        %1111 = vmatprep.subr.bf16.mxu0 0
        %1112 = vmatpush1.bf16.xpose.msra.mxu0 0
        %1113 = vmatprep.subr.bf16.mxu0 0
        %1114 = vmatpush1.bf16.xpose.msra.mxu0 0
        %1115 = vmatprep.subr.bf16.mxu0 0
        %1116 = vmatpush1.bf16.xpose.msra.mxu0 0
        %1117 = vmatprep.subr.bf16.mxu0 0
        %1118 = vmatpush1.bf16.xpose.msra.mxu0 0
        %1119 = vmatprep.subr.bf16.mxu0 0
        %1120 = vmatpush1.bf16.xpose.msra.mxu0 0
        %1121 = vmatprep.subr.bf16.mxu0 0
        %1122 = vmatpush1.bf16.xpose.msra.mxu0 0
        %1123 = vmatprep.subr.bf16.mxu0 0
        %1124 = vmatpush1.bf16.xpose.msra.mxu0 0
        %1125 = vmatprep.subr.bf16.mxu0 0
        %1126 = vmatpush1.bf16.xpose.msra.mxu0 0
        %1127 = vmatprep.subr.bf16.mxu0 0
        %1128 = vmatpush1.bf16.xpose.msra.mxu0 0
        %1129 = vmatprep.subr.bf16.mxu0 0
        %1130 = vmatpush1.bf16.xpose.msra.mxu0 0
        %1131 = vmatprep.subr.bf16.mxu0 0
        %1132 = vmatpush1.bf16.xpose.msra.mxu0 0
        %1133 = vmatprep.subr.bf16.mxu0 0
        %1134 = vmatpush1.bf16.xpose.msra.mxu0 0
        %1135 = vmatprep.subr.bf16.mxu0 0
        %1136 = vmatpush1.bf16.xpose.msra.mxu0 0
        %1137 = vmatprep.mubr.bf16.mxu0 0
        %1138 = vmatmul.mubr.bf16.gmra.mrb[0].mxu0 %v1100
        %v1139 = vpop.f32.mrb[0].mxu0
        %v1140 = vadd.f32 %v722, %v1139
        %v1141 = vpop.f32.mrb[0].mxu0
        %v1142 = vpop.f32.mrb[0].mxu0
        %v1143 = vpop.f32.mrb[0].mxu0
        %1144 = vdwg.mxu0
        %1145 = vrot.lane.b32.xlu0 %v867, 112
        %v1146 = vpop.permute.xlu0 %1145
        %1147 = vrot.lane.b32.xlu0 %v928, 48
        %v1148 = vpop.permute.xlu0 %1147
        %v1150 = vsel %vm881, %v1146, 0
        %v1153 = vsel %vm881, %v1148, 0
        %1155 = vmatprep.subr.bf16.mxu0 0
        %1156 = vmatpush1.bf16.xpose.msra.mxu0 %v1153
        %1157 = vmatprep.subr.bf16.mxu0 0
        %1158 = vmatpush1.bf16.xpose.msra.mxu0 0
        %1159 = vmatprep.subr.bf16.mxu0 0
        %1160 = vmatpush1.bf16.xpose.msra.mxu0 0
        %1161 = vmatprep.subr.bf16.mxu0 0
        %1162 = vmatpush1.bf16.xpose.msra.mxu0 0
        %1163 = vmatprep.subr.bf16.mxu0 0
        %1164 = vmatpush1.bf16.xpose.msra.mxu0 0
        %1165 = vmatprep.subr.bf16.mxu0 0
        %1166 = vmatpush1.bf16.xpose.msra.mxu0 0
        %1167 = vmatprep.subr.bf16.mxu0 0
        %1168 = vmatpush1.bf16.xpose.msra.mxu0 0
        %1169 = vmatprep.subr.bf16.mxu0 0
        %1170 = vmatpush1.bf16.xpose.msra.mxu0 0
        %1171 = vmatprep.subr.bf16.mxu0 0
        %1172 = vmatpush1.bf16.xpose.msra.mxu0 0
        %1173 = vmatprep.subr.bf16.mxu0 0
        %1174 = vmatpush1.bf16.xpose.msra.mxu0 0
        %1175 = vmatprep.subr.bf16.mxu0 0
        %1176 = vmatpush1.bf16.xpose.msra.mxu0 0
        %1177 = vmatprep.subr.bf16.mxu0 0
        %1178 = vmatpush1.bf16.xpose.msra.mxu0 0
        %1179 = vmatprep.subr.bf16.mxu0 0
        %1180 = vmatpush1.bf16.xpose.msra.mxu0 0
        %1181 = vmatprep.subr.bf16.mxu0 0
        %1182 = vmatpush1.bf16.xpose.msra.mxu0 0
        %1183 = vmatprep.subr.bf16.mxu0 0
        %1184 = vmatpush1.bf16.xpose.msra.mxu0 0
        %1185 = vmatprep.subr.bf16.mxu0 0
        %1186 = vmatpush1.bf16.xpose.msra.mxu0 0
        %1187 = vmatprep.mubr.bf16.mxu0 0
        %1188 = vmatmul.mubr.bf16.gmra.mrb[0].mxu0 %v1150
        %v1189 = vpop.f32.mrb[0].mxu0
        %v1190 = vadd.f32 %v723, %v1189
        %v1191 = vpop.f32.mrb[0].mxu0
        %v1192 = vpop.f32.mrb[0].mxu0
        %v1193 = vpop.f32.mrb[0].mxu0
        %1194 = vdwg.mxu0
        %v1195 = vsel %vm977, %v1140, -inf
        %1196 = vmax.xlane.f32.xlu0 %v1195
        %v1197 = vpop.xlane.xlu0 %1196
        %v1198 = vsel %vm977, %v1190, -inf
        %1199 = vmax.xlane.f32.xlu0 %v1198
        %v1200 = vpop.xlane.xlu0 %1199
        %v1201 = vsub.f32 %v1140, %v1197
        %v1202 = vsub.f32 %v1190, %v1200
        %v1203 = vmul.f32 %v1201, 1.442695
        %v1204 = vpow.pop %v1203
        %v1205 = vmul.f32 %v1202, 1.442695
        %v1206 = vpow.pop %v1205
        %v1207 = vsel %vm977, %v1204, 0.0
        %1208 = vadd.xlane.f32.xlu0 %v1207
        %v1209 = vpop.xlane.xlu0 %1208
        %v1210 = vsel %vm977, %v1206, 0.0
        %1211 = vadd.xlane.f32.xlu0 %v1210
        %v1212 = vpop.xlane.xlu0 %1211
        %v1213 = vrcp.pop %v1209
        %v1214 = vrcp.pop %v1212
        %v1215 = vmul.f32 %v1204, %v1213
        %v1216 = vmul.f32 %v1206, %v1214
        %v1217 = vpack.c.bf16 %v1215, %v1215
        %v1218 = vpack.c.bf16 %v1216, %v1216
        %1219 = vrot.lane.b32.xlu0 %v876, 112
        %v1220 = vpop.permute.xlu0 %1219
        %v1222 = vsel %vm977, %v1217, 0
        %v1225 = vsel %vm1005, %v1220, 0
        %1227 = vmatprep.subr.bf16.mxu0 0
        %1228 = vmatpush1.bf16.msra.mxu0 %v1225
        %1229 = vmatprep.subr.bf16.mxu0 0
        %1230 = vmatpush1.bf16.msra.mxu0 0
        %1231 = vmatprep.subr.bf16.mxu0 0
        %1232 = vmatpush1.bf16.msra.mxu0 0
        %1233 = vmatprep.subr.bf16.mxu0 0
        %1234 = vmatpush1.bf16.msra.mxu0 0
        %1235 = vmatprep.subr.bf16.mxu0 0
        %1236 = vmatpush1.bf16.msra.mxu0 0
        %1237 = vmatprep.subr.bf16.mxu0 0
        %1238 = vmatpush1.bf16.msra.mxu0 0
        %1239 = vmatprep.subr.bf16.mxu0 0
        %1240 = vmatpush1.bf16.msra.mxu0 0
        %1241 = vmatprep.subr.bf16.mxu0 0
        %1242 = vmatpush1.bf16.msra.mxu0 0
        %1243 = vmatprep.subr.bf16.mxu0 0
        %1244 = vmatpush1.bf16.msra.mxu0 0
        %1245 = vmatprep.subr.bf16.mxu0 0
        %1246 = vmatpush1.bf16.msra.mxu0 0
        %1247 = vmatprep.subr.bf16.mxu0 0
        %1248 = vmatpush1.bf16.msra.mxu0 0
        %1249 = vmatprep.subr.bf16.mxu0 0
        %1250 = vmatpush1.bf16.msra.mxu0 0
        %1251 = vmatprep.subr.bf16.mxu0 0
        %1252 = vmatpush1.bf16.msra.mxu0 0
        %1253 = vmatprep.subr.bf16.mxu0 0
        %1254 = vmatpush1.bf16.msra.mxu0 0
        %1255 = vmatprep.subr.bf16.mxu0 0
        %1256 = vmatpush1.bf16.msra.mxu0 0
        %1257 = vmatprep.subr.bf16.mxu0 0
        %1258 = vmatpush1.bf16.msra.mxu0 0
        %1259 = vmatprep.mubr.bf16.mxu0 0
        %1260 = vmatmul.mubr.bf16.gmra.mrb[0].mxu0 %v1222
        %v1261 = vpop.f32.mrb[0].mxu0
        %v1262 = vadd.f32 0.0, %v1261
        %v1263 = vpop.f32.mrb[0].mxu0
        %v1264 = vpop.f32.mrb[0].mxu0
        %v1265 = vpop.f32.mrb[0].mxu0
        %1266 = vdwg.mxu0
        %1267 = vrot.lane.b32.xlu0 %v877, 112
        %v1268 = vpop.permute.xlu0 %1267
        %v1270 = vsel %vm977, %v1218, 0
        %v1273 = vsel %vm1005, %v1268, 0
        %1275 = vmatprep.subr.bf16.mxu0 0
        %1276 = vmatpush1.bf16.msra.mxu0 %v1273
        %1277 = vmatprep.subr.bf16.mxu0 0
        %1278 = vmatpush1.bf16.msra.mxu0 0
        %1279 = vmatprep.subr.bf16.mxu0 0
        %1280 = vmatpush1.bf16.msra.mxu0 0
        %1281 = vmatprep.subr.bf16.mxu0 0
        %1282 = vmatpush1.bf16.msra.mxu0 0
        %1283 = vmatprep.subr.bf16.mxu0 0
        %1284 = vmatpush1.bf16.msra.mxu0 0
        %1285 = vmatprep.subr.bf16.mxu0 0
        %1286 = vmatpush1.bf16.msra.mxu0 0
        %1287 = vmatprep.subr.bf16.mxu0 0
        %1288 = vmatpush1.bf16.msra.mxu0 0
        %1289 = vmatprep.subr.bf16.mxu0 0
        %1290 = vmatpush1.bf16.msra.mxu0 0
        %1291 = vmatprep.subr.bf16.mxu0 0
        %1292 = vmatpush1.bf16.msra.mxu0 0
        %1293 = vmatprep.subr.bf16.mxu0 0
        %1294 = vmatpush1.bf16.msra.mxu0 0
        %1295 = vmatprep.subr.bf16.mxu0 0
        %1296 = vmatpush1.bf16.msra.mxu0 0
        %1297 = vmatprep.subr.bf16.mxu0 0
        %1298 = vmatpush1.bf16.msra.mxu0 0
        %1299 = vmatprep.subr.bf16.mxu0 0
        %1300 = vmatpush1.bf16.msra.mxu0 0
        %1301 = vmatprep.subr.bf16.mxu0 0
        %1302 = vmatpush1.bf16.msra.mxu0 0
        %1303 = vmatprep.subr.bf16.mxu0 0
        %1304 = vmatpush1.bf16.msra.mxu0 0
        %1305 = vmatprep.subr.bf16.mxu0 0
        %1306 = vmatpush1.bf16.msra.mxu0 0
        %1307 = vmatprep.mubr.bf16.mxu0 0
        %1308 = vmatmul.mubr.bf16.gmra.mrb[0].mxu0 %v1270
        %v1309 = vpop.f32.mrb[0].mxu0
        %v1310 = vadd.f32 0.0, %v1309
        %v1311 = vpop.f32.mrb[0].mxu0
        %v1312 = vpop.f32.mrb[0].mxu0
        %v1313 = vpop.f32.mrb[0].mxu0
        %1314 = vdwg.mxu0
        %1315 = vrot.lane.b32.xlu0 %v866, 96
        %v1316 = vpop.permute.xlu0 %1315
        %1317 = vrot.lane.b32.xlu0 %v878, 32
        %v1318 = vpop.permute.xlu0 %1317
        %v1320 = vsel %vm881, %v1316, 0
        %v1323 = vsel %vm881, %v1318, 0
        %1325 = vmatprep.subr.bf16.mxu0 0
        %1326 = vmatpush1.bf16.xpose.msra.mxu0 %v1323
        %1327 = vmatprep.subr.bf16.mxu0 0
        %1328 = vmatpush1.bf16.xpose.msra.mxu0 0
        %1329 = vmatprep.subr.bf16.mxu0 0
        %1330 = vmatpush1.bf16.xpose.msra.mxu0 0
        %1331 = vmatprep.subr.bf16.mxu0 0
        %1332 = vmatpush1.bf16.xpose.msra.mxu0 0
        %1333 = vmatprep.subr.bf16.mxu0 0
        %1334 = vmatpush1.bf16.xpose.msra.mxu0 0
        %1335 = vmatprep.subr.bf16.mxu0 0
        %1336 = vmatpush1.bf16.xpose.msra.mxu0 0
        %1337 = vmatprep.subr.bf16.mxu0 0
        %1338 = vmatpush1.bf16.xpose.msra.mxu0 0
        %1339 = vmatprep.subr.bf16.mxu0 0
        %1340 = vmatpush1.bf16.xpose.msra.mxu0 0
        %1341 = vmatprep.subr.bf16.mxu0 0
        %1342 = vmatpush1.bf16.xpose.msra.mxu0 0
        %1343 = vmatprep.subr.bf16.mxu0 0
        %1344 = vmatpush1.bf16.xpose.msra.mxu0 0
        %1345 = vmatprep.subr.bf16.mxu0 0
        %1346 = vmatpush1.bf16.xpose.msra.mxu0 0
        %1347 = vmatprep.subr.bf16.mxu0 0
        %1348 = vmatpush1.bf16.xpose.msra.mxu0 0
        %1349 = vmatprep.subr.bf16.mxu0 0
        %1350 = vmatpush1.bf16.xpose.msra.mxu0 0
        %1351 = vmatprep.subr.bf16.mxu0 0
        %1352 = vmatpush1.bf16.xpose.msra.mxu0 0
        %1353 = vmatprep.subr.bf16.mxu0 0
        %1354 = vmatpush1.bf16.xpose.msra.mxu0 0
        %1355 = vmatprep.subr.bf16.mxu0 0
        %1356 = vmatpush1.bf16.xpose.msra.mxu0 0
        %1357 = vmatprep.mubr.bf16.mxu0 0
        %1358 = vmatmul.mubr.bf16.gmra.mrb[0].mxu0 %v1320
        %v1359 = vpop.f32.mrb[0].mxu0
        %v1360 = vadd.f32 %v722, %v1359
        %v1361 = vpop.f32.mrb[0].mxu0
        %v1362 = vpop.f32.mrb[0].mxu0
        %v1363 = vpop.f32.mrb[0].mxu0
        %1364 = vdwg.mxu0
        %1365 = vrot.lane.b32.xlu0 %v867, 96
        %v1366 = vpop.permute.xlu0 %1365
        %1367 = vrot.lane.b32.xlu0 %v928, 32
        %v1368 = vpop.permute.xlu0 %1367
        %v1370 = vsel %vm881, %v1366, 0
        %v1373 = vsel %vm881, %v1368, 0
        %1375 = vmatprep.subr.bf16.mxu0 0
        %1376 = vmatpush1.bf16.xpose.msra.mxu0 %v1373
        %1377 = vmatprep.subr.bf16.mxu0 0
        %1378 = vmatpush1.bf16.xpose.msra.mxu0 0
        %1379 = vmatprep.subr.bf16.mxu0 0
        %1380 = vmatpush1.bf16.xpose.msra.mxu0 0
        %1381 = vmatprep.subr.bf16.mxu0 0
        %1382 = vmatpush1.bf16.xpose.msra.mxu0 0
        %1383 = vmatprep.subr.bf16.mxu0 0
        %1384 = vmatpush1.bf16.xpose.msra.mxu0 0
        %1385 = vmatprep.subr.bf16.mxu0 0
        %1386 = vmatpush1.bf16.xpose.msra.mxu0 0
        %1387 = vmatprep.subr.bf16.mxu0 0
        %1388 = vmatpush1.bf16.xpose.msra.mxu0 0
        %1389 = vmatprep.subr.bf16.mxu0 0
        %1390 = vmatpush1.bf16.xpose.msra.mxu0 0
        %1391 = vmatprep.subr.bf16.mxu0 0
        %1392 = vmatpush1.bf16.xpose.msra.mxu0 0
        %1393 = vmatprep.subr.bf16.mxu0 0
        %1394 = vmatpush1.bf16.xpose.msra.mxu0 0
        %1395 = vmatprep.subr.bf16.mxu0 0
        %1396 = vmatpush1.bf16.xpose.msra.mxu0 0
        %1397 = vmatprep.subr.bf16.mxu0 0
        %1398 = vmatpush1.bf16.xpose.msra.mxu0 0
        %1399 = vmatprep.subr.bf16.mxu0 0
        %1400 = vmatpush1.bf16.xpose.msra.mxu0 0
        %1401 = vmatprep.subr.bf16.mxu0 0
        %1402 = vmatpush1.bf16.xpose.msra.mxu0 0
        %1403 = vmatprep.subr.bf16.mxu0 0
        %1404 = vmatpush1.bf16.xpose.msra.mxu0 0
        %1405 = vmatprep.subr.bf16.mxu0 0
        %1406 = vmatpush1.bf16.xpose.msra.mxu0 0
        %1407 = vmatprep.mubr.bf16.mxu0 0
        %1408 = vmatmul.mubr.bf16.gmra.mrb[0].mxu0 %v1370
        %v1409 = vpop.f32.mrb[0].mxu0
        %v1410 = vadd.f32 %v723, %v1409
        %v1411 = vpop.f32.mrb[0].mxu0
        %v1412 = vpop.f32.mrb[0].mxu0
        %v1413 = vpop.f32.mrb[0].mxu0
        %1414 = vdwg.mxu0
        %v1415 = vsel %vm977, %v1360, -inf
        %1416 = vmax.xlane.f32.xlu0 %v1415
        %v1417 = vpop.xlane.xlu0 %1416
        %v1418 = vsel %vm977, %v1410, -inf
        %1419 = vmax.xlane.f32.xlu0 %v1418
        %v1420 = vpop.xlane.xlu0 %1419
        %v1421 = vsub.f32 %v1360, %v1417
        %v1422 = vsub.f32 %v1410, %v1420
        %v1423 = vmul.f32 %v1421, 1.442695
        %v1424 = vpow.pop %v1423
        %v1425 = vmul.f32 %v1422, 1.442695
        %v1426 = vpow.pop %v1425
        %v1427 = vsel %vm977, %v1424, 0.0
        %1428 = vadd.xlane.f32.xlu0 %v1427
        %v1429 = vpop.xlane.xlu0 %1428
        %v1430 = vsel %vm977, %v1426, 0.0
        %1431 = vadd.xlane.f32.xlu0 %v1430
        %v1432 = vpop.xlane.xlu0 %1431
        %v1433 = vrcp.pop %v1429
        %v1434 = vrcp.pop %v1432
        %v1435 = vmul.f32 %v1424, %v1433
        %v1436 = vmul.f32 %v1426, %v1434
        %v1437 = vpack.c.bf16 %v1435, %v1435
        %v1438 = vpack.c.bf16 %v1436, %v1436
        %1439 = vrot.lane.b32.xlu0 %v876, 96
        %v1440 = vpop.permute.xlu0 %1439
        %v1442 = vsel %vm977, %v1437, 0
        %v1445 = vsel %vm1005, %v1440, 0
        %1447 = vmatprep.subr.bf16.mxu0 0
        %1448 = vmatpush1.bf16.msra.mxu0 %v1445
        %1449 = vmatprep.subr.bf16.mxu0 0
        %1450 = vmatpush1.bf16.msra.mxu0 0
        %1451 = vmatprep.subr.bf16.mxu0 0
        %1452 = vmatpush1.bf16.msra.mxu0 0
        %1453 = vmatprep.subr.bf16.mxu0 0
        %1454 = vmatpush1.bf16.msra.mxu0 0
        %1455 = vmatprep.subr.bf16.mxu0 0
        %1456 = vmatpush1.bf16.msra.mxu0 0
        %1457 = vmatprep.subr.bf16.mxu0 0
        %1458 = vmatpush1.bf16.msra.mxu0 0
        %1459 = vmatprep.subr.bf16.mxu0 0
        %1460 = vmatpush1.bf16.msra.mxu0 0
        %1461 = vmatprep.subr.bf16.mxu0 0
        %1462 = vmatpush1.bf16.msra.mxu0 0
        %1463 = vmatprep.subr.bf16.mxu0 0
        %1464 = vmatpush1.bf16.msra.mxu0 0
        %1465 = vmatprep.subr.bf16.mxu0 0
        %1466 = vmatpush1.bf16.msra.mxu0 0
        %1467 = vmatprep.subr.bf16.mxu0 0
        %1468 = vmatpush1.bf16.msra.mxu0 0
        %1469 = vmatprep.subr.bf16.mxu0 0
        %1470 = vmatpush1.bf16.msra.mxu0 0
        %1471 = vmatprep.subr.bf16.mxu0 0
        %1472 = vmatpush1.bf16.msra.mxu0 0
        %1473 = vmatprep.subr.bf16.mxu0 0
        %1474 = vmatpush1.bf16.msra.mxu0 0
        %1475 = vmatprep.subr.bf16.mxu0 0
        %1476 = vmatpush1.bf16.msra.mxu0 0
        %1477 = vmatprep.subr.bf16.mxu0 0
        %1478 = vmatpush1.bf16.msra.mxu0 0
        %1479 = vmatprep.mubr.bf16.mxu0 0
        %1480 = vmatmul.mubr.bf16.gmra.mrb[0].mxu0 %v1442
        %v1481 = vpop.f32.mrb[0].mxu0
        %v1482 = vadd.f32 0.0, %v1481
        %v1483 = vpop.f32.mrb[0].mxu0
        %v1484 = vpop.f32.mrb[0].mxu0
        %v1485 = vpop.f32.mrb[0].mxu0
        %1486 = vdwg.mxu0
        %1487 = vrot.lane.b32.xlu0 %v877, 96
        %v1488 = vpop.permute.xlu0 %1487
        %v1490 = vsel %vm977, %v1438, 0
        %v1493 = vsel %vm1005, %v1488, 0
        %1495 = vmatprep.subr.bf16.mxu0 0
        %1496 = vmatpush1.bf16.msra.mxu0 %v1493
        %1497 = vmatprep.subr.bf16.mxu0 0
        %1498 = vmatpush1.bf16.msra.mxu0 0
        %1499 = vmatprep.subr.bf16.mxu0 0
        %1500 = vmatpush1.bf16.msra.mxu0 0
        %1501 = vmatprep.subr.bf16.mxu0 0
        %1502 = vmatpush1.bf16.msra.mxu0 0
        %1503 = vmatprep.subr.bf16.mxu0 0
        %1504 = vmatpush1.bf16.msra.mxu0 0
        %1505 = vmatprep.subr.bf16.mxu0 0
        %1506 = vmatpush1.bf16.msra.mxu0 0
        %1507 = vmatprep.subr.bf16.mxu0 0
        %1508 = vmatpush1.bf16.msra.mxu0 0
        %1509 = vmatprep.subr.bf16.mxu0 0
        %1510 = vmatpush1.bf16.msra.mxu0 0
        %1511 = vmatprep.subr.bf16.mxu0 0
        %1512 = vmatpush1.bf16.msra.mxu0 0
        %1513 = vmatprep.subr.bf16.mxu0 0
        %1514 = vmatpush1.bf16.msra.mxu0 0
        %1515 = vmatprep.subr.bf16.mxu0 0
        %1516 = vmatpush1.bf16.msra.mxu0 0
        %1517 = vmatprep.subr.bf16.mxu0 0
        %1518 = vmatpush1.bf16.msra.mxu0 0
        %1519 = vmatprep.subr.bf16.mxu0 0
        %1520 = vmatpush1.bf16.msra.mxu0 0
        %1521 = vmatprep.subr.bf16.mxu0 0
        %1522 = vmatpush1.bf16.msra.mxu0 0
        %1523 = vmatprep.subr.bf16.mxu0 0
        %1524 = vmatpush1.bf16.msra.mxu0 0
        %1525 = vmatprep.subr.bf16.mxu0 0
        %1526 = vmatpush1.bf16.msra.mxu0 0
        %1527 = vmatprep.mubr.bf16.mxu0 0
        %1528 = vmatmul.mubr.bf16.gmra.mrb[0].mxu0 %v1490
        %v1529 = vpop.f32.mrb[0].mxu0
        %v1530 = vadd.f32 0.0, %v1529
        %v1531 = vpop.f32.mrb[0].mxu0
        %v1532 = vpop.f32.mrb[0].mxu0
        %v1533 = vpop.f32.mrb[0].mxu0
        %1534 = vdwg.mxu0
        %1535 = vrot.lane.b32.xlu0 %v866, 80
        %v1536 = vpop.permute.xlu0 %1535
        %1537 = vrot.lane.b32.xlu0 %v878, 16
        %v1538 = vpop.permute.xlu0 %1537
        %v1540 = vsel %vm881, %v1536, 0
        %v1543 = vsel %vm881, %v1538, 0
        %1545 = vmatprep.subr.bf16.mxu0 0
        %1546 = vmatpush1.bf16.xpose.msra.mxu0 %v1543
        %1547 = vmatprep.subr.bf16.mxu0 0
        %1548 = vmatpush1.bf16.xpose.msra.mxu0 0
        %1549 = vmatprep.subr.bf16.mxu0 0
        %1550 = vmatpush1.bf16.xpose.msra.mxu0 0
        %1551 = vmatprep.subr.bf16.mxu0 0
        %1552 = vmatpush1.bf16.xpose.msra.mxu0 0
        %1553 = vmatprep.subr.bf16.mxu0 0
        %1554 = vmatpush1.bf16.xpose.msra.mxu0 0
        %1555 = vmatprep.subr.bf16.mxu0 0
        %1556 = vmatpush1.bf16.xpose.msra.mxu0 0
        %1557 = vmatprep.subr.bf16.mxu0 0
        %1558 = vmatpush1.bf16.xpose.msra.mxu0 0
        %1559 = vmatprep.subr.bf16.mxu0 0
        %1560 = vmatpush1.bf16.xpose.msra.mxu0 0
        %1561 = vmatprep.subr.bf16.mxu0 0
        %1562 = vmatpush1.bf16.xpose.msra.mxu0 0
        %1563 = vmatprep.subr.bf16.mxu0 0
        %1564 = vmatpush1.bf16.xpose.msra.mxu0 0
        %1565 = vmatprep.subr.bf16.mxu0 0
        %1566 = vmatpush1.bf16.xpose.msra.mxu0 0
        %1567 = vmatprep.subr.bf16.mxu0 0
        %1568 = vmatpush1.bf16.xpose.msra.mxu0 0
        %1569 = vmatprep.subr.bf16.mxu0 0
        %1570 = vmatpush1.bf16.xpose.msra.mxu0 0
        %1571 = vmatprep.subr.bf16.mxu0 0
        %1572 = vmatpush1.bf16.xpose.msra.mxu0 0
        %1573 = vmatprep.subr.bf16.mxu0 0
        %1574 = vmatpush1.bf16.xpose.msra.mxu0 0
        %1575 = vmatprep.subr.bf16.mxu0 0
        %1576 = vmatpush1.bf16.xpose.msra.mxu0 0
        %1577 = vmatprep.mubr.bf16.mxu0 0
        %1578 = vmatmul.mubr.bf16.gmra.mrb[0].mxu0 %v1540
        %v1579 = vpop.f32.mrb[0].mxu0
        %v1580 = vadd.f32 %v722, %v1579
        %v1581 = vpop.f32.mrb[0].mxu0
        %v1582 = vpop.f32.mrb[0].mxu0
        %v1583 = vpop.f32.mrb[0].mxu0
        %1584 = vdwg.mxu0
        %1585 = vrot.lane.b32.xlu0 %v867, 80
        %v1586 = vpop.permute.xlu0 %1585
        %1587 = vrot.lane.b32.xlu0 %v928, 16
        %v1588 = vpop.permute.xlu0 %1587
        %v1590 = vsel %vm881, %v1586, 0
        %v1593 = vsel %vm881, %v1588, 0
        %1595 = vmatprep.subr.bf16.mxu0 0
        %1596 = vmatpush1.bf16.xpose.msra.mxu0 %v1593
        %1597 = vmatprep.subr.bf16.mxu0 0
        %1598 = vmatpush1.bf16.xpose.msra.mxu0 0
        %1599 = vmatprep.subr.bf16.mxu0 0
        %1600 = vmatpush1.bf16.xpose.msra.mxu0 0
        %1601 = vmatprep.subr.bf16.mxu0 0
        %1602 = vmatpush1.bf16.xpose.msra.mxu0 0
        %1603 = vmatprep.subr.bf16.mxu0 0
        %1604 = vmatpush1.bf16.xpose.msra.mxu0 0
        %1605 = vmatprep.subr.bf16.mxu0 0
        %1606 = vmatpush1.bf16.xpose.msra.mxu0 0
        %1607 = vmatprep.subr.bf16.mxu0 0
        %1608 = vmatpush1.bf16.xpose.msra.mxu0 0
        %1609 = vmatprep.subr.bf16.mxu0 0
        %1610 = vmatpush1.bf16.xpose.msra.mxu0 0
        %1611 = vmatprep.subr.bf16.mxu0 0
        %1612 = vmatpush1.bf16.xpose.msra.mxu0 0
        %1613 = vmatprep.subr.bf16.mxu0 0
        %1614 = vmatpush1.bf16.xpose.msra.mxu0 0
        %1615 = vmatprep.subr.bf16.mxu0 0
        %1616 = vmatpush1.bf16.xpose.msra.mxu0 0
        %1617 = vmatprep.subr.bf16.mxu0 0
        %1618 = vmatpush1.bf16.xpose.msra.mxu0 0
        %1619 = vmatprep.subr.bf16.mxu0 0
        %1620 = vmatpush1.bf16.xpose.msra.mxu0 0
        %1621 = vmatprep.subr.bf16.mxu0 0
        %1622 = vmatpush1.bf16.xpose.msra.mxu0 0
        %1623 = vmatprep.subr.bf16.mxu0 0
        %1624 = vmatpush1.bf16.xpose.msra.mxu0 0
        %1625 = vmatprep.subr.bf16.mxu0 0
        %1626 = vmatpush1.bf16.xpose.msra.mxu0 0
        %1627 = vmatprep.mubr.bf16.mxu0 0
        %1628 = vmatmul.mubr.bf16.gmra.mrb[0].mxu0 %v1590
        %v1629 = vpop.f32.mrb[0].mxu0
        %v1630 = vadd.f32 %v723, %v1629
        %v1631 = vpop.f32.mrb[0].mxu0
        %v1632 = vpop.f32.mrb[0].mxu0
        %v1633 = vpop.f32.mrb[0].mxu0
        %1634 = vdwg.mxu0
        %v1635 = vsel %vm977, %v1580, -inf
        %1636 = vmax.xlane.f32.xlu0 %v1635
        %v1637 = vpop.xlane.xlu0 %1636
        %v1638 = vsel %vm977, %v1630, -inf
        %1639 = vmax.xlane.f32.xlu0 %v1638
        %v1640 = vpop.xlane.xlu0 %1639
        %v1641 = vsub.f32 %v1580, %v1637
        %v1642 = vsub.f32 %v1630, %v1640
        %v1643 = vmul.f32 %v1641, 1.442695
        %v1644 = vpow.pop %v1643
        %v1645 = vmul.f32 %v1642, 1.442695
        %v1646 = vpow.pop %v1645
        %v1647 = vsel %vm977, %v1644, 0.0
        %1648 = vadd.xlane.f32.xlu0 %v1647
        %v1649 = vpop.xlane.xlu0 %1648
        %v1650 = vsel %vm977, %v1646, 0.0
        %1651 = vadd.xlane.f32.xlu0 %v1650
        %v1652 = vpop.xlane.xlu0 %1651
        %v1653 = vrcp.pop %v1649
        %v1654 = vrcp.pop %v1652
        %v1655 = vmul.f32 %v1644, %v1653
        %v1656 = vmul.f32 %v1646, %v1654
        %v1657 = vpack.c.bf16 %v1655, %v1655
        %v1658 = vpack.c.bf16 %v1656, %v1656
        %1659 = vrot.lane.b32.xlu0 %v876, 80
        %v1660 = vpop.permute.xlu0 %1659
        %v1662 = vsel %vm977, %v1657, 0
        %v1665 = vsel %vm1005, %v1660, 0
        %1667 = vmatprep.subr.bf16.mxu0 0
        %1668 = vmatpush1.bf16.msra.mxu0 %v1665
        %1669 = vmatprep.subr.bf16.mxu0 0
        %1670 = vmatpush1.bf16.msra.mxu0 0
        %1671 = vmatprep.subr.bf16.mxu0 0
        %1672 = vmatpush1.bf16.msra.mxu0 0
        %1673 = vmatprep.subr.bf16.mxu0 0
        %1674 = vmatpush1.bf16.msra.mxu0 0
        %1675 = vmatprep.subr.bf16.mxu0 0
        %1676 = vmatpush1.bf16.msra.mxu0 0
        %1677 = vmatprep.subr.bf16.mxu0 0
        %1678 = vmatpush1.bf16.msra.mxu0 0
        %1679 = vmatprep.subr.bf16.mxu0 0
        %1680 = vmatpush1.bf16.msra.mxu0 0
        %1681 = vmatprep.subr.bf16.mxu0 0
        %1682 = vmatpush1.bf16.msra.mxu0 0
        %1683 = vmatprep.subr.bf16.mxu0 0
        %1684 = vmatpush1.bf16.msra.mxu0 0
        %1685 = vmatprep.subr.bf16.mxu0 0
        %1686 = vmatpush1.bf16.msra.mxu0 0
        %1687 = vmatprep.subr.bf16.mxu0 0
        %1688 = vmatpush1.bf16.msra.mxu0 0
        %1689 = vmatprep.subr.bf16.mxu0 0
        %1690 = vmatpush1.bf16.msra.mxu0 0
        %1691 = vmatprep.subr.bf16.mxu0 0
        %1692 = vmatpush1.bf16.msra.mxu0 0
        %1693 = vmatprep.subr.bf16.mxu0 0
        %1694 = vmatpush1.bf16.msra.mxu0 0
        %1695 = vmatprep.subr.bf16.mxu0 0
        %1696 = vmatpush1.bf16.msra.mxu0 0
        %1697 = vmatprep.subr.bf16.mxu0 0
        %1698 = vmatpush1.bf16.msra.mxu0 0
        %1699 = vmatprep.mubr.bf16.mxu0 0
        %1700 = vmatmul.mubr.bf16.gmra.mrb[0].mxu0 %v1662
        %v1701 = vpop.f32.mrb[0].mxu0
        %v1702 = vadd.f32 0.0, %v1701
        %v1703 = vpop.f32.mrb[0].mxu0
        %v1704 = vpop.f32.mrb[0].mxu0
        %v1705 = vpop.f32.mrb[0].mxu0
        %1706 = vdwg.mxu0
        %1707 = vrot.lane.b32.xlu0 %v877, 80
        %v1708 = vpop.permute.xlu0 %1707
        %v1710 = vsel %vm977, %v1658, 0
        %v1713 = vsel %vm1005, %v1708, 0
        %1715 = vmatprep.subr.bf16.mxu0 0
        %1716 = vmatpush1.bf16.msra.mxu0 %v1713
        %1717 = vmatprep.subr.bf16.mxu0 0
        %1718 = vmatpush1.bf16.msra.mxu0 0
        %1719 = vmatprep.subr.bf16.mxu0 0
        %1720 = vmatpush1.bf16.msra.mxu0 0
        %1721 = vmatprep.subr.bf16.mxu0 0
        %1722 = vmatpush1.bf16.msra.mxu0 0
        %1723 = vmatprep.subr.bf16.mxu0 0
        %1724 = vmatpush1.bf16.msra.mxu0 0
        %1725 = vmatprep.subr.bf16.mxu0 0
        %1726 = vmatpush1.bf16.msra.mxu0 0
        %1727 = vmatprep.subr.bf16.mxu0 0
        %1728 = vmatpush1.bf16.msra.mxu0 0
        %1729 = vmatprep.subr.bf16.mxu0 0
        %1730 = vmatpush1.bf16.msra.mxu0 0
        %1731 = vmatprep.subr.bf16.mxu0 0
        %1732 = vmatpush1.bf16.msra.mxu0 0
        %1733 = vmatprep.subr.bf16.mxu0 0
        %1734 = vmatpush1.bf16.msra.mxu0 0
        %1735 = vmatprep.subr.bf16.mxu0 0
        %1736 = vmatpush1.bf16.msra.mxu0 0
        %1737 = vmatprep.subr.bf16.mxu0 0
        %1738 = vmatpush1.bf16.msra.mxu0 0
        %1739 = vmatprep.subr.bf16.mxu0 0
        %1740 = vmatpush1.bf16.msra.mxu0 0
        %1741 = vmatprep.subr.bf16.mxu0 0
        %1742 = vmatpush1.bf16.msra.mxu0 0
        %1743 = vmatprep.subr.bf16.mxu0 0
        %1744 = vmatpush1.bf16.msra.mxu0 0
        %1745 = vmatprep.subr.bf16.mxu0 0
        %1746 = vmatpush1.bf16.msra.mxu0 0
        %1747 = vmatprep.mubr.bf16.mxu0 0
        %1748 = vmatmul.mubr.bf16.gmra.mrb[0].mxu0 %v1710
        %v1749 = vpop.f32.mrb[0].mxu0
        %v1750 = vadd.f32 0.0, %v1749
        %v1751 = vpop.f32.mrb[0].mxu0
        %v1752 = vpop.f32.mrb[0].mxu0
        %v1753 = vpop.f32.mrb[0].mxu0
        %1754 = vdwg.mxu0
        %1757 = vrot.lane.b32.xlu0 %v1262, 16
        %v1758 = vpop.permute.xlu0 %1757
        %1759 = vrot.lane.b32.xlu0 %v1310, 16
        %v1760 = vpop.permute.xlu0 %1759
        %1765 = vrot.lane.b32.xlu0 %v1482, 32
        %v1766 = vpop.permute.xlu0 %1765
        %1767 = vrot.lane.b32.xlu0 %v1530, 32
        %v1768 = vpop.permute.xlu0 %1767
        %1773 = vrot.lane.b32.xlu0 %v1702, 48
        %v1774 = vpop.permute.xlu0 %1773
        %1775 = vrot.lane.b32.xlu0 %v1750, 48
        %v1776 = vpop.permute.xlu0 %1775
        %v1779 = vsel %vm881, %v1044, %v1758
        %v1780 = vsel %vm881, %v1090, %v1760
        %vm1781 = vcmask 261120
        %v1782 = vsel %vm1781, %v1779, %v1766
        %v1783 = vsel %vm1781, %v1780, %v1768
        %vm1784 = vcmask 392192
        %v1785 = vsel %vm1784, %v1782, %v1774
        %v1786 = vsel %vm1784, %v1783, %v1776
        %v1787 = vpack.c.bf16 %v1786, %v1785
        %v1788 = vld [vmem:[%s643] sm:$0xf]
        %v1789 = vld [vmem:[%s643 + $0x4] sm:$0xf]
        %v1790 = vld [vmem:[%s643 + $0x8] sm:$0xf]
        %v1791 = vld [vmem:[%s643 + $0xc] sm:$0xf]
        %v1792 = vld [vmem:[%s643 + $0x10] sm:$0xf]
        %v1793 = vld [vmem:[%s643 + $0x14] sm:$0xf]
        %v1794 = vld [vmem:[%s643 + $0x18] sm:$0xf]
        %v1795 = vld [vmem:[%s643 + $0x1c] sm:$0xf]
        %v1796 = vlaneseq
        %v1797 = vshrl.u32 %v1796, 7
        %v1798 = vsub.s32 2, %v1797
        %v1799 = vrot.slane %v724, %v1798
        %v1808 = vunpack.c.l.b16 %v1788
        %v1809 = vunpack.c.l.b16 %v1789
        %v1810 = vunpack.c.l.b16 %v1790
        %v1811 = vunpack.c.l.b16 %v1791
        %v1812 = vunpack.c.l.b16 %v1792
        %v1813 = vunpack.c.l.b16 %v1793
        %v1814 = vunpack.c.l.b16 %v1794
        %v1815 = vunpack.c.l.b16 %v1795
        %v1816 = vpack.c.b16 %v1809, %v1808
        %v1817 = vpack.c.b16 %v1811, %v1810
        %v1818 = vpack.c.b16 %v1813, %v1812
        %v1819 = vpack.c.b16 %v1815, %v1814
        %v1825 = vsel %vm725, %v1787, 0
        %1827 = vmatprep.subr.bf16.mxu0 0
        %1828 = vmatpush1.bf16.msra.mxu0 %v1816
        %1829 = vmatprep.subr.bf16.mxu0 0
        %1830 = vmatpush1.bf16.msra.mxu0 %v1817
        %1831 = vmatprep.subr.bf16.mxu0 0
        %1832 = vmatpush1.bf16.msra.mxu0 %v1818
        %1833 = vmatprep.subr.bf16.mxu0 0
        %1834 = vmatpush1.bf16.msra.mxu0 %v1819
        %1835 = vmatprep.subr.bf16.mxu0 0
        %1836 = vmatpush1.bf16.msra.mxu0 0
        %1837 = vmatprep.subr.bf16.mxu0 0
        %1838 = vmatpush1.bf16.msra.mxu0 0
        %1839 = vmatprep.subr.bf16.mxu0 0
        %1840 = vmatpush1.bf16.msra.mxu0 0
        %1841 = vmatprep.subr.bf16.mxu0 0
        %1842 = vmatpush1.bf16.msra.mxu0 0
        %1843 = vmatprep.subr.bf16.mxu0 0
        %1844 = vmatpush1.bf16.msra.mxu0 0
        %1845 = vmatprep.subr.bf16.mxu0 0
        %1846 = vmatpush1.bf16.msra.mxu0 0
        %1847 = vmatprep.subr.bf16.mxu0 0
        %1848 = vmatpush1.bf16.msra.mxu0 0
        %1849 = vmatprep.subr.bf16.mxu0 0
        %1850 = vmatpush1.bf16.msra.mxu0 0
        %1851 = vmatprep.subr.bf16.mxu0 0
        %1852 = vmatpush1.bf16.msra.mxu0 0
        %1853 = vmatprep.subr.bf16.mxu0 0
        %1854 = vmatpush1.bf16.msra.mxu0 0
        %1855 = vmatprep.subr.bf16.mxu0 0
        %1856 = vmatpush1.bf16.msra.mxu0 0
        %1857 = vmatprep.subr.bf16.mxu0 0
        %1858 = vmatpush1.bf16.msra.mxu0 0
        %1859 = vmatprep.mubr.bf16.mxu0 0
        %1860 = vmatmul.mubr.bf16.gmra.mrb[0].mxu0 %v1825
        %v1861 = vpop.f32.mrb[0].mxu0
        %v1862 = vadd.f32 %v1799, %v1861
        %v1863 = vpop.f32.mrb[0].mxu0
        %v1864 = vpop.f32.mrb[0].mxu0
        %v1865 = vadd.f32 %v1799, %v1864
        %v1866 = vpop.f32.mrb[0].mxu0
        %1867 = vdwg.mxu0
        %v1868 = vadd.f32 %v720, %v1862
        %v1869 = vadd.f32 %v721, %v1865
        %v1870 = vsel %vm725, %v1868, 0.0
        %1871 = vadd.xlane.f32.xlu0 %v1870
        %v1872 = vpop.xlane.xlu0 %1871
        %v1873 = vsel %vm725, %v1869, 0.0
        %1874 = vadd.xlane.f32.xlu0 %v1873
        %v1875 = vpop.xlane.xlu0 %1874
        %v1876 = vmul.f32 %v1872, %v732
        %v1877 = vmul.f32 %v1875, %v732
        %v1878 = vsub.f32 %v1868, %v1876
        %v1879 = vsub.f32 %v1869, %v1877
        %v1880 = vmul.f32 %v1878, %v1878
        %v1881 = vmul.f32 %v1879, %v1879
        %v1882 = vsel %vm725, %v1880, 0.0
        %1883 = vadd.xlane.f32.xlu0 %v1882
        %v1884 = vpop.xlane.xlu0 %1883
        %v1885 = vsel %vm725, %v1881, 0.0
        %1886 = vadd.xlane.f32.xlu0 %v1885
        %v1887 = vpop.xlane.xlu0 %1886
        %v1888 = vmul.f32 %v1884, %v732
        %v1889 = vmul.f32 %v1887, %v732
        %v1890 = vadd.f32 %v1888, 1e-05
        %v1891 = vadd.f32 %v1889, 1e-05
        %v1892 = vrsqrt.pop %v1890
        %v1893 = vrsqrt.pop %v1891
        %v1894 = vmul.f32 %v1878, %v1892
        %v1895 = vmul.f32 %v1879, %v1893
        %v1896 = vlaneseq
        %v1897 = vshrl.u32 %v1896, 7
        %v1898 = vsub.s32 3, %v1897
        %v1899 = vrot.slane %v724, %v1898
        %v1900 = vmul.f32 %v1894, %v1899
        %v1901 = vmul.f32 %v1895, %v1899
        %v1902 = vlaneseq
        %v1903 = vshrl.u32 %v1902, 7
        %v1904 = vsub.s32 4, %v1903
        %v1905 = vrot.slane %v724, %v1904
        %v1906 = vadd.f32 %v1900, %v1905
        %v1907 = vadd.f32 %v1901, %v1905
        %v1908 = vpack.c.bf16 %v1907, %v1906
        %v1909 = vld [vmem:[%s541] sm:$0xf]
        %v1910 = vld [vmem:[%s541 + $0x4] sm:$0xf]
        %v1911 = vld [vmem:[%s541 + $0x8] sm:$0xf]
        %v1912 = vld [vmem:[%s541 + $0xc] sm:$0xf]
        %v1913 = vld [vmem:[%s541 + $0x10] sm:$0xf]
        %v1914 = vld [vmem:[%s541 + $0x14] sm:$0xf]
        %v1915 = vld [vmem:[%s541 + $0x18] sm:$0xf]
        %v1916 = vld [vmem:[%s541 + $0x1c] sm:$0xf]
        %v1917 = vld [vmem:[%s549] sm:$0x1]
        %v1919 = vlaneseq
        %v1920 = vshrl.u32 %v1919, 7
        %v1921 = vsub.s32 0, %v1920
        %v1922 = vrot.slane %v1917, %v1921
        %v1932 = vunpack.c.l.b16 %v1909
        %v1933 = vunpack.c.l.b16 %v1910
        %v1934 = vunpack.c.l.b16 %v1911
        %v1935 = vunpack.c.l.b16 %v1912
        %v1936 = vunpack.c.l.b16 %v1913
        %v1937 = vunpack.c.l.b16 %v1914
        %v1938 = vunpack.c.l.b16 %v1915
        %v1939 = vunpack.c.l.b16 %v1916
        %v1940 = vpack.c.b16 %v1933, %v1932
        %v1941 = vpack.c.b16 %v1935, %v1934
        %v1942 = vpack.c.b16 %v1937, %v1936
        %v1943 = vpack.c.b16 %v1939, %v1938
        %v1949 = vsel %vm725, %v1908, 0
        %1951 = vmatprep.subr.bf16.mxu0 0
        %1952 = vmatpush1.bf16.msra.mxu0 %v1940
        %1953 = vmatprep.subr.bf16.mxu0 0
        %1954 = vmatpush1.bf16.msra.mxu0 %v1941
        %1955 = vmatprep.subr.bf16.mxu0 0
        %1956 = vmatpush1.bf16.msra.mxu0 %v1942
        %1957 = vmatprep.subr.bf16.mxu0 0
        %1958 = vmatpush1.bf16.msra.mxu0 %v1943
        %1959 = vmatprep.subr.bf16.mxu0 0
        %1960 = vmatpush1.bf16.msra.mxu0 0
        %1961 = vmatprep.subr.bf16.mxu0 0
        %1962 = vmatpush1.bf16.msra.mxu0 0
        %1963 = vmatprep.subr.bf16.mxu0 0
        %1964 = vmatpush1.bf16.msra.mxu0 0
        %1965 = vmatprep.subr.bf16.mxu0 0
        %1966 = vmatpush1.bf16.msra.mxu0 0
        %1967 = vmatprep.subr.bf16.mxu0 0
        %1968 = vmatpush1.bf16.msra.mxu0 0
        %1969 = vmatprep.subr.bf16.mxu0 0
        %1970 = vmatpush1.bf16.msra.mxu0 0
        %1971 = vmatprep.subr.bf16.mxu0 0
        %1972 = vmatpush1.bf16.msra.mxu0 0
        %1973 = vmatprep.subr.bf16.mxu0 0
        %1974 = vmatpush1.bf16.msra.mxu0 0
        %1975 = vmatprep.subr.bf16.mxu0 0
        %1976 = vmatpush1.bf16.msra.mxu0 0
        %1977 = vmatprep.subr.bf16.mxu0 0
        %1978 = vmatpush1.bf16.msra.mxu0 0
        %1979 = vmatprep.subr.bf16.mxu0 0
        %1980 = vmatpush1.bf16.msra.mxu0 0
        %1981 = vmatprep.subr.bf16.mxu0 0
        %1982 = vmatpush1.bf16.msra.mxu0 0
        %1983 = vmatprep.mubr.bf16.mxu0 0
        %1984 = vmatmul.mubr.bf16.gmra.mrb[0].mxu0 %v1949
        %v1985 = vpop.f32.mrb[0].mxu0
        %v1986 = vadd.f32 %v1922, %v1985
        %v1987 = vpop.f32.mrb[0].mxu0
        %v1988 = vpop.f32.mrb[0].mxu0
        %v1989 = vadd.f32 %v1922, %v1988
        %v1990 = vpop.f32.mrb[0].mxu0
        %1991 = vdwg.mxu0
        %v1992 = vmul.f32 %v1986, 0.5
        %v1993 = vmul.f32 %v1989, 0.5
        %v1994 = vmul.f32 %v1986, 0.70710677
        %v1995 = vmul.f32 %v1989, 0.70710677
        %v1996 = verf.f32.pop %v1994
        %v1997 = verf.f32.pop %v1995
        %v1998 = vadd.f32 %v1996, 1.0
        %v1999 = vadd.f32 %v1997, 1.0
        %v2000 = vmul.f32 %v1992, %v1998
        %v2001 = vmul.f32 %v1993, %v1999
        %v2002 = vpack.c.bf16 %v2001, %v2000
        %v2003 = vld [vmem:[%s648] sm:$0xf]
        %v2004 = vld [vmem:[%s648 + $0x4] sm:$0xf]
        %v2005 = vld [vmem:[%s648 + $0x8] sm:$0xf]
        %v2006 = vld [vmem:[%s648 + $0xc] sm:$0xf]
        %v2007 = vld [vmem:[%s648 + $0x10] sm:$0xf]
        %v2008 = vld [vmem:[%s648 + $0x14] sm:$0xf]
        %v2009 = vld [vmem:[%s648 + $0x18] sm:$0xf]
        %v2010 = vld [vmem:[%s648 + $0x1c] sm:$0xf]
        %v2011 = vld [vmem:[%s648 + $0x20] sm:$0xf]
        %v2012 = vld [vmem:[%s648 + $0x24] sm:$0xf]
        %v2013 = vld [vmem:[%s648 + $0x28] sm:$0xf]
        %v2014 = vld [vmem:[%s648 + $0x2c] sm:$0xf]
        %v2015 = vld [vmem:[%s648 + $0x30] sm:$0xf]
        %v2016 = vld [vmem:[%s648 + $0x34] sm:$0xf]
        %v2017 = vld [vmem:[%s648 + $0x38] sm:$0xf]
        %v2018 = vld [vmem:[%s648 + $0x3c] sm:$0xf]
        %v2019 = vlaneseq
        %v2020 = vshrl.u32 %v2019, 7
        %v2021 = vsub.s32 5, %v2020
        %v2022 = vrot.slane %v724, %v2021
        %v2039 = vunpack.c.l.b16 %v2003
        %v2040 = vunpack.c.l.b16 %v2004
        %v2041 = vunpack.c.l.b16 %v2005
        %v2042 = vunpack.c.l.b16 %v2006
        %v2043 = vunpack.c.l.b16 %v2007
        %v2044 = vunpack.c.l.b16 %v2008
        %v2045 = vunpack.c.l.b16 %v2009
        %v2046 = vunpack.c.l.b16 %v2010
        %v2047 = vunpack.c.l.b16 %v2011
        %v2048 = vunpack.c.l.b16 %v2012
        %v2049 = vunpack.c.l.b16 %v2013
        %v2050 = vunpack.c.l.b16 %v2014
        %v2051 = vunpack.c.l.b16 %v2015
        %v2052 = vunpack.c.l.b16 %v2016
        %v2053 = vunpack.c.l.b16 %v2017
        %v2054 = vunpack.c.l.b16 %v2018
        %v2055 = vpack.c.b16 %v2040, %v2039
        %v2056 = vpack.c.b16 %v2042, %v2041
        %v2057 = vpack.c.b16 %v2044, %v2043
        %v2058 = vpack.c.b16 %v2046, %v2045
        %v2059 = vpack.c.b16 %v2048, %v2047
        %v2060 = vpack.c.b16 %v2050, %v2049
        %v2061 = vpack.c.b16 %v2052, %v2051
        %v2062 = vpack.c.b16 %v2054, %v2053
        %2071 = vmatprep.subr.bf16.mxu0 0
        %2072 = vmatpush1.bf16.msra.mxu0 %v2055
        %2073 = vmatprep.subr.bf16.mxu0 0
        %2074 = vmatpush1.bf16.msra.mxu0 %v2056
        %2075 = vmatprep.subr.bf16.mxu0 0
        %2076 = vmatpush1.bf16.msra.mxu0 %v2057
        %2077 = vmatprep.subr.bf16.mxu0 0
        %2078 = vmatpush1.bf16.msra.mxu0 %v2058
        %2079 = vmatprep.subr.bf16.mxu0 0
        %2080 = vmatpush1.bf16.msra.mxu0 %v2059
        %2081 = vmatprep.subr.bf16.mxu0 0
        %2082 = vmatpush1.bf16.msra.mxu0 %v2060
        %2083 = vmatprep.subr.bf16.mxu0 0
        %2084 = vmatpush1.bf16.msra.mxu0 %v2061
        %2085 = vmatprep.subr.bf16.mxu0 0
        %2086 = vmatpush1.bf16.msra.mxu0 %v2062
        %2087 = vmatprep.subr.bf16.mxu0 0
        %2088 = vmatpush1.bf16.msra.mxu0 0
        %2089 = vmatprep.subr.bf16.mxu0 0
        %2090 = vmatpush1.bf16.msra.mxu0 0
        %2091 = vmatprep.subr.bf16.mxu0 0
        %2092 = vmatpush1.bf16.msra.mxu0 0
        %2093 = vmatprep.subr.bf16.mxu0 0
        %2094 = vmatpush1.bf16.msra.mxu0 0
        %2095 = vmatprep.subr.bf16.mxu0 0
        %2096 = vmatpush1.bf16.msra.mxu0 0
        %2097 = vmatprep.subr.bf16.mxu0 0
        %2098 = vmatpush1.bf16.msra.mxu0 0
        %2099 = vmatprep.subr.bf16.mxu0 0
        %2100 = vmatpush1.bf16.msra.mxu0 0
        %2101 = vmatprep.subr.bf16.mxu0 0
        %2102 = vmatpush1.bf16.msra.mxu0 0
        %2103 = vmatprep.mubr.bf16.mxu0 0
        %2104 = vmatmul.mubr.bf16.gmra.mrb[0].mxu0 %v2002
        %v2105 = vpop.f32.mrb[0].mxu0
        %v2106 = vadd.f32 %v2022, %v2105
        %v2107 = vpop.f32.mrb[0].mxu0
        %v2108 = vpop.f32.mrb[0].mxu0
        %v2109 = vadd.f32 %v2022, %v2108
        %v2110 = vpop.f32.mrb[0].mxu0
        %2111 = vdwg.mxu0
        %v2112 = vadd.f32 %v1906, %v2106
        %v2113 = vadd.f32 %v1907, %v2109
        %2114 = vst.msk [vmem:[#allocation2] sm:$0xff] %vm725, %v2112
        %2115 = vst.msk [vmem:[#allocation2 + $0x8] sm:$0xff] %vm725, %v2113
        %p2116 = scmp.eq.s32.totalorder %s39, 1
        // Predicated region
        $region93: #{tpu_custom_call.1} parent=75 // pred_check
          %p2117 = pneg %p2116
        $region94: #{tpu_custom_call.1} parent=75 // pred_check_branch
          %2119 = sbr.rel (%p2117) target = $region96
        $region95: #{tpu_custom_call.1} parent=75 // pred_region
          %v2120 = vld [vmem:[#allocation10] sm:$0x1]
          %v2121 = vld [vmem:[%s9] sm:$0x1]
          %v2122 = vsel %vm725, %v2112, 0.0
          %2123 = vadd.xlane.f32.xlu0 %v2122
          %v2124 = vpop.xlane.xlu0 %2123
          %v2125 = vsel %vm725, %v2113, 0.0
          %2126 = vadd.xlane.f32.xlu0 %v2125
          %v2127 = vpop.xlane.xlu0 %2126
          %v2128 = vmul.f32 %v2124, %v732
          %v2129 = vmul.f32 %v2127, %v732
          %v2130 = vsub.f32 %v2112, %v2128
          %v2131 = vsub.f32 %v2113, %v2129
          %v2132 = vmul.f32 %v2130, %v2130
          %v2133 = vmul.f32 %v2131, %v2131
          %v2134 = vsel %vm725, %v2132, 0.0
          %2135 = vadd.xlane.f32.xlu0 %v2134
          %v2136 = vpop.xlane.xlu0 %2135
          %v2137 = vsel %vm725, %v2133, 0.0
          %2138 = vadd.xlane.f32.xlu0 %v2137
          %v2139 = vpop.xlane.xlu0 %2138
          %v2140 = vmul.f32 %v2136, %v732
          %v2141 = vmul.f32 %v2139, %v732
          %v2142 = vadd.f32 %v2140, 1e-05
          %v2143 = vadd.f32 %v2141, 1e-05
          %v2144 = vrsqrt.pop %v2142
          %v2145 = vrsqrt.pop %v2143
          %v2146 = vmul.f32 %v2130, %v2144
          %v2147 = vmul.f32 %v2131, %v2145
          %v2149 = vlaneseq
          %v2150 = vshrl.u32 %v2149, 7
          %v2151 = vsub.s32 0, %v2150
          %v2152 = vrot.slane %v2120, %v2151
          %v2154 = vmul.f32 %v2146, %v2152
          %v2155 = vmul.f32 %v2147, %v2152
          %v2157 = vlaneseq
          %v2158 = vshrl.u32 %v2157, 7
          %v2159 = vsub.s32 0, %v2158
          %v2160 = vrot.slane %v2121, %v2159
          %v2162 = vadd.f32 %v2154, %v2160
          %v2163 = vadd.f32 %v2155, %v2160
          %v2164 = vld [vmem:[%s10] sm:$0x1]
          %v2166 = vlaneseq
          %v2167 = vshrl.u32 %v2166, 7
          %v2168 = vsub.s32 0, %v2167
          %v2169 = vrot.slane %v2164, %v2168
          %v2171 = vmul.f32 %v2162, %v2169
          %v2172 = vmul.f32 %v2163, %v2169
          %v2173 = vsel %vm725, %v2171, 0.0
          %2174 = vadd.xlane.f32.xlu0 %v2173
          %v2175 = vpop.xlane.xlu0 %2174
          %v2176 = vsel %vm725, %v2172, 0.0
          %2177 = vadd.xlane.f32.xlu0 %v2176
          %v2178 = vpop.xlane.xlu0 %2177
          %v2179 = vld [vmem:[#allocation4] sm:$0x1]
          %v2181 = vlaneseq
          %v2182 = vshrl.u32 %v2181, 7
          %v2183 = vsub.s32 0, %v2182
          %v2184 = vrot.slane %v2179, %v2183
          %v2186 = vadd.f32 %v2175, %v2184
          %v2187 = vadd.f32 %v2178, %v2184
          %vm2188 = vcmask 7168
          %v2189 = vsel %vm2188, %v2186, -inf
          %v2190 = vrot.slane %v2189, 4
          %v2191 = vmax.f32 %v2189, %v2190
          %v2192 = vrot.slane %v2191, 2
          %v2193 = vmax.f32 %v2191, %v2192
          %v2194 = vrot.slane %v2193, 1
          %v2195 = vmax.f32 %v2193, %v2194
          %v2196 = vsel %vm2188, %v2187, -inf
          %v2197 = vrot.slane %v2196, 4
          %v2198 = vmax.f32 %v2196, %v2197
          %v2199 = vrot.slane %v2198, 2
          %v2200 = vmax.f32 %v2198, %v2199
          %v2201 = vrot.slane %v2200, 1
          %v2202 = vmax.f32 %v2200, %v2201
          %v2203 = vsub.f32 %v2186, %v2195
          %v2204 = vsub.f32 %v2187, %v2202
          %v2205 = vmul.f32 %v2203, 1.442695
          %v2206 = vpow.pop %v2205
          %v2207 = vmul.f32 %v2204, 1.442695
          %v2208 = vpow.pop %v2207
          %v2209 = vsel %vm2188, %v2206, 0.0
          %v2210 = vrot.slane %v2209, 4
          %v2211 = vadd.f32 %v2209, %v2210
          %v2212 = vrot.slane %v2211, 2
          %v2213 = vadd.f32 %v2211, %v2212
          %v2214 = vrot.slane %v2213, 1
          %v2215 = vadd.f32 %v2213, %v2214
          %v2216 = vsel %vm2188, %v2208, 0.0
          %v2217 = vrot.slane %v2216, 4
          %v2218 = vadd.f32 %v2216, %v2217
          %v2219 = vrot.slane %v2218, 2
          %v2220 = vadd.f32 %v2218, %v2219
          %v2221 = vrot.slane %v2220, 1
          %v2222 = vadd.f32 %v2220, %v2221
          %v2223 = vrcp.pop %v2215
          %v2224 = vrcp.pop %v2222
          %v2225 = vmul.f32 %v2206, %v2223
          %v2226 = vmul.f32 %v2208, %v2224
          %2228 = vset.pattern.permute.xlu0 0
          %2229 = vperm.xlu0 %2228, %v2225
          %v2230 = vpop.permute.xlu0 %2229
          %2233 = vset.pattern.permute.xlu0 0
          %2234 = vperm.xlu0 %2233, %v2226
          %v2235 = vpop.permute.xlu0 %2234
          %v2237 = vmul.f32 %v2230, %v2162
          %v2238 = vmul.f32 %v2235, %v2163
          %v2239 = vsel %vm725, %v2237, 0.0
          %v2240 = vrot.slane %v2239, 4
          %v2241 = vadd.f32 %v2239, %v2240
          %v2242 = vrot.slane %v2241, 2
          %v2243 = vadd.f32 %v2241, %v2242
          %v2244 = vrot.slane %v2243, 1
          %v2245 = vadd.f32 %v2243, %v2244
          %v2246 = vsel %vm725, %v2238, 0.0
          %v2247 = vrot.slane %v2246, 4
          %v2248 = vadd.f32 %v2246, %v2247
          %v2249 = vrot.slane %v2248, 2
          %v2250 = vadd.f32 %v2248, %v2249
          %v2251 = vrot.slane %v2250, 1
          %v2252 = vadd.f32 %v2250, %v2251
          %v2253 = vpack.c.bf16 %v2245, %v2245
          %v2254 = vpack.c.bf16 %v2252, %v2252
          %v2255 = vld [vmem:[%s12] sm:$0xf]
          %v2256 = vld [vmem:[%s12 + $0x4] sm:$0xf]
          %v2257 = vld [vmem:[%s12 + $0x8] sm:$0xf]
          %v2258 = vld [vmem:[%s12 + $0xc] sm:$0xf]
          %v2259 = vld [vmem:[%s12 + $0x10] sm:$0xf]
          %v2260 = vld [vmem:[%s12 + $0x14] sm:$0xf]
          %v2261 = vld [vmem:[%s12 + $0x18] sm:$0xf]
          %v2262 = vld [vmem:[%s12 + $0x1c] sm:$0xf]
          %v2263 = vld [vmem:[%s13] sm:$0x1]
          %v2265 = vlaneseq
          %v2266 = vshrl.u32 %v2265, 7
          %v2267 = vsub.s32 0, %v2266
          %v2268 = vrot.slane %v2263, %v2267
          %v2272 = vunpack.c.l.b16 %v2253
          %v2273 = vunpack.c.l.b16 %v2254
          %vm2274 = vcmask 1041409
          %v2275 = vsel %vm2274, %v2273, %v2272
          %v2276 = vpack.c.b16 %v2275, %v2275
          %v2285 = vunpack.c.l.b16 %v2255
          %v2286 = vunpack.c.l.b16 %v2256
          %v2287 = vunpack.c.l.b16 %v2257
          %v2288 = vunpack.c.l.b16 %v2258
          %v2289 = vunpack.c.l.b16 %v2259
          %v2290 = vunpack.c.l.b16 %v2260
          %v2291 = vunpack.c.l.b16 %v2261
          %v2292 = vunpack.c.l.b16 %v2262
          %v2293 = vpack.c.b16 %v2286, %v2285
          %v2294 = vpack.c.b16 %v2288, %v2287
          %v2295 = vpack.c.b16 %v2290, %v2289
          %v2296 = vpack.c.b16 %v2292, %v2291
          %v2302 = vsel %vm725, %v2276, 0
          %2304 = vmatprep.subr.bf16.mxu0 0
          %2305 = vmatpush1.bf16.msra.mxu0 %v2293
          %2306 = vmatprep.subr.bf16.mxu0 0
          %2307 = vmatpush1.bf16.msra.mxu0 %v2294
          %2308 = vmatprep.subr.bf16.mxu0 0
          %2309 = vmatpush1.bf16.msra.mxu0 %v2295
          %2310 = vmatprep.subr.bf16.mxu0 0
          %2311 = vmatpush1.bf16.msra.mxu0 %v2296
          %2312 = vmatprep.subr.bf16.mxu0 0
          %2313 = vmatpush1.bf16.msra.mxu0 0
          %2314 = vmatprep.subr.bf16.mxu0 0
          %2315 = vmatpush1.bf16.msra.mxu0 0
          %2316 = vmatprep.subr.bf16.mxu0 0
          %2317 = vmatpush1.bf16.msra.mxu0 0
          %2318 = vmatprep.subr.bf16.mxu0 0
          %2319 = vmatpush1.bf16.msra.mxu0 0
          %2320 = vmatprep.subr.bf16.mxu0 0
          %2321 = vmatpush1.bf16.msra.mxu0 0
          %2322 = vmatprep.subr.bf16.mxu0 0
          %2323 = vmatpush1.bf16.msra.mxu0 0
          %2324 = vmatprep.subr.bf16.mxu0 0
          %2325 = vmatpush1.bf16.msra.mxu0 0
          %2326 = vmatprep.subr.bf16.mxu0 0
          %2327 = vmatpush1.bf16.msra.mxu0 0
          %2328 = vmatprep.subr.bf16.mxu0 0
          %2329 = vmatpush1.bf16.msra.mxu0 0
          %2330 = vmatprep.subr.bf16.mxu0 0
          %2331 = vmatpush1.bf16.msra.mxu0 0
          %2332 = vmatprep.subr.bf16.mxu0 0
          %2333 = vmatpush1.bf16.msra.mxu0 0
          %2334 = vmatprep.subr.bf16.mxu0 0
          %2335 = vmatpush1.bf16.msra.mxu0 0
          %2336 = vmatprep.mubr.bf16.mxu0 0
          %2337 = vmatmul.mubr.bf16.gmra.mrb[0].mxu0 %v2302
          %v2338 = vpop.f32.mrb[0].mxu0
          %v2339 = vadd.f32 %v2268, %v2338
          %v2340 = vpop.f32.mrb[0].mxu0
          %v2341 = vpop.f32.mrb[0].mxu0
          %v2342 = vpop.f32.mrb[0].mxu0
          %2343 = vdwg.mxu0
          %vm2344 = vcmask 123904
          %2345 = vst.msk [vmem:[#allocation11] sm:$0x3] %vm2344, %v2339
        $region96: #{tpu_custom_call.1} parent=75 // pred_fallthru
          _
        // Predicated region
        $region97: #{tpu_custom_call.1} parent=75 // pred_check
          %p2346 = pneg %p398
        $region98: #{tpu_custom_call.1} parent=75 // pred_check_branch
          %2348 = sbr.rel (%p2346) target = $region100
        $region99: #{tpu_custom_call.1} parent=75 // pred_region
          %s2350 = ssub.s32 32, 32
          %2351 = vsyncadd [#allocation7], %s2350
          %s2352 = smul.addr %s38, 32
          %s2353 = scalar_lea.hbm %s14, %s2352
          %s2355 = sshll.u32 [#allocation11], 4
          %s2356 = int_to_ptr.vmem [resolvable:$true] %s2355
          %2358 = dma.vmem_to_hbm [thread:$0]  %s2356, 32, %s2353, [#allocation7]
        $region100: #{tpu_custom_call.1} parent=75 // pred_fallthru
          _
        // Predicated region
        $region101: #{tpu_custom_call.1} parent=75 // pred_check
          %p2359 = pneg %p398
        $region102: #{tpu_custom_call.1} parent=75 // pred_check_branch
          %2361 = sbr.rel (%p2359) target = $region104
        $region103: #{tpu_custom_call.1} parent=75 // pred_region
          %2362 = dma.done [#allocation7], 32
        $region104: #{tpu_custom_call.1} parent=75 // pred_fallthru
          _
      $region76: #{tpu_custom_call.1} parent=5 // pred_fallthru
        _
      %p2363 = scmp.le.s32.totalorder 2, %s29
      // Predicated region
      $region105: #{tpu_custom_call.1} parent=5 // pred_check
        %p2364 = pneg %p2363
      $region106: #{tpu_custom_call.1} parent=5 // pred_check_branch
        %2366 = sbr.rel (%p2364) target = $region108
      $region107: #{tpu_custom_call.1} parent=5 // pred_region
        %s2367 = ssub.s32 %s29, 2
      $region108: #{tpu_custom_call.1} parent=5 // pred_fallthru
        _
    $region6: #{tpu_custom_call.1} parent=1 // loop_footer
      %s33 = sadd.s32 1, %s29
    $region7: #{tpu_custom_call.1} parent=1 // loop_footer_branch
      %28 = sbr.rel target = $region3
    $region8: #{tpu_custom_call.1} parent=1 // loop_exit
      _
    %2368 = vsyncpa [#allocation6], 1
    %s2369 = scalar_lea.sflag [#allocation6], 1
    %2370 = vsyncpa %s2369, 1
    %2371 = vsyncpa [#allocation9], 1
    %s2372 = scalar_lea.sflag [#allocation9], 1
    %2373 = vsyncpa %s2372, 1
    %2374 = vsyncpa [#allocation7], 1
    %s2375 = scalar_lea.sflag [#allocation7], 1
    %2376 = vsyncpa %s2375, 1

</llo_original>
